<compile_context>
chip_gen: v7x
topology: tpu7x:2x2x1
jax: 0.10.0
libtpu: 0.0.40
codegen_flags: <defaults>
</compile_context>

<pallas_src>
import jax
import jax.numpy as jnp
from jax import lax
from jax.experimental import pallas as pl
from jax.experimental.pallas import tpu as pltpu

LATENT_DIM = 8                       # per-ladder-level latent size (offsets below assume 8)
H1 = 256                             # bottom-up / decoder hidden width
H2 = 128                             # top hidden width
IMG_C, IMG_H, IMG_W = 1, 28, 28      # MNIST-like input
IN_DIM = IMG_C * IMG_H * IMG_W       # 784
L2 = 2 * LATENT_DIM                  # packed [mu | logvar] width

# Packed-bias lane offsets (all 128-aligned), total padded to 17*128 = 2176.
BO_WE1, BO_WE2, BO_WQ2 = 0, 256, 384
BO_WT1, BO_WP1, BO_WQ1 = 512, 640, 768
BO_WD0, BO_WD1, BO_WD2 = 896, 1024, 1280
BIAS_TOTAL = 2176

# Packed-weight column offsets.
# w256 (rows = 256): [ we2 (128) | wq1 padded to 128 | wd2 (784) ]  -> (256, 1040)
C256_WE2, C256_WQ1, C256_WD2 = 0, 128, 256
# w128 (rows = 128): [ wq2 padded to 128 | wp1 padded to 128 | wd1 (256) ] -> (128, 512)
C128_WQ2, C128_WP1, C128_WD1 = 0, 128, 256
# w8 (rows = 8):    [ wt1 (128) | wd0 (128) ]                      -> (8, 256)
C8_WT1, C8_WD0 = 0, 128


# ------------------------------ fused kernel --------------------------------

def _ladder_vae_kernel(x_ref, eps_ref, w784_ref, w256_ref, w128_ref, w8_ref,
                       b_ref, out_ref):
    f32 = jnp.float32
    bf16 = jnp.bfloat16
    L = LATENT_DIM

    x = x_ref[...]                                               # (tb, 784) f32

    # ---- bottom-up deterministic pass (vencoder) ----
    d1 = jnp.maximum(
        jnp.dot(x.astype(bf16), w784_ref[...], preferred_element_type=f32)
        + b_ref[:, BO_WE1:BO_WE1 + H1], 0.0)                     # (tb, 256)

    # Fused MXU pass over d1: bottom-up layer 2 (we2) + bottom-up likelihood
    # head (wq1) share the contraction input, so one matmul over 256 packed
    # columns, split by lane slice.
    fused = jnp.dot(d1.astype(bf16), w256_ref[:, C256_WE2:C256_WD2],
                    preferred_element_type=f32)                  # (tb, 256)
    d2 = jnp.maximum(fused[:, 0:H2] + b_ref[:, BO_WE2:BO_WE2 + H2], 0.0)
    l1 = fused[:, C256_WQ1:C256_WQ1 + L2] + b_ref[:, BO_WQ1:BO_WQ1 + L2]

    # ---- top-level posterior q(z2|x): [mu2 | logvar2] + reparam ----
    q2 = (jnp.dot(d2.astype(bf16), w128_ref[:, C128_WQ2:C128_WQ2 + L2],
                  preferred_element_type=f32)
          + b_ref[:, BO_WQ2:BO_WQ2 + L2])
    mu2, lv2 = q2[:, :L], q2[:, L:L2]
    z2 = mu2 + jnp.exp(0.5 * lv2) * eps_ref[:, L:L2]

    # ---- top-down deterministic state (shared decoder path) ----
    t1 = jnp.maximum(
        jnp.dot(z2.astype(bf16), w8_ref[:, C8_WT1:C8_WT1 + H2],
                preferred_element_type=f32)
        + b_ref[:, BO_WT1:BO_WT1 + H2], 0.0)                     # (tb, 128)

    # ---- ladder level 1: prior + bottom-up likelihood, precision merge ----
    p1 = (jnp.dot(t1.astype(bf16), w128_ref[:, C128_WP1:C128_WP1 + L2],
                  preferred_element_type=f32)
          + b_ref[:, BO_WP1:BO_WP1 + L2])
    mu_p, lv_p = p1[:, :L], p1[:, L:L2]
    mu_l, lv_l = l1[:, :L], l1[:, L:L2]
    # TODO(synk): logvars are not clamped here (matching the assumed original
    # forward); exp(-lv) can overflow if training drives logvar very negative.
    prec_p = jnp.exp(-lv_p)
    prec_l = jnp.exp(-lv_l)
    prec = prec_p + prec_l
    var_q1 = pl.reciprocal(prec, approx=True)                    # EUP vrcp
    std_q1 = lax.rsqrt(prec)                                     # EUP vrsqrt
    mu_q1 = (mu_p * prec_p + mu_l * prec_l) * var_q1
    z1 = mu_q1 + std_q1 * eps_ref[:, 0:L]

    # ---- generative top-down decode (decoder(z)) ----
    u = jnp.maximum(
        jnp.dot(z1.astype(bf16), w8_ref[:, C8_WD0:C8_WD0 + H2],
                preferred_element_type=f32)
        + b_ref[:, BO_WD0:BO_WD0 + H2] + t1, 0.0)                # (tb, 128)
    h = jnp.maximum(
        jnp.dot(u.astype(bf16), w128_ref[:, C128_WD1:C128_WD1 + H1],
                preferred_element_type=f32)
        + b_ref[:, BO_WD1:BO_WD1 + H1], 0.0)                     # (tb, 256)
    logits = (jnp.dot(h.astype(bf16), w256_ref[:, C256_WD2:C256_WD2 + IN_DIM],
                      preferred_element_type=f32)
              + b_ref[:, BO_WD2:BO_WD2 + IN_DIM])                # (tb, 784)
    # TODO(synk): "optimal sigma" decoder variance is a closed-form loss-time
    # quantity; the forward pass returns only the decoded mean.
    out_ref[...] = jax.nn.sigmoid(logits)


# ------------------------------- wrapper -------------------------------------

def ladder_vae_forward(params, x, eps1, eps2, *, batch_tile=512):
    """x_hat = decoder(vencoder(x, decoder)); all layers fused in one kernel."""
    B = x.shape[0]
    x_flat = x.reshape(B, IN_DIM).astype(jnp.float32)
    eps = jnp.concatenate([eps1, eps2], axis=1).astype(jnp.float32)  # (B, 16)

    if B <= batch_tile:
        tb, Bp = B, B                       # single step: block == full array
    else:
        tb = batch_tile                     # multiple of 8 -> valid block dim
        Bp = ((B + tb - 1) // tb) * tb
        x_flat = jnp.pad(x_flat, ((0, Bp - B), (0, 0)))
        eps = jnp.pad(eps, ((0, Bp - B), (0, 0)))

    w784, w256, w128, w8, b = (params["w784"], params["w256"], params["w128"],
                               params["w8"], params["b"])

    def batch_spec(width):
        return pl.BlockSpec((tb, width), lambda i: (i, 0))

    def const_spec(a):
        # Constant block index -> weight DMA'd once, VMEM-resident across steps.
        return pl.BlockSpec(a.shape, lambda i: (0, 0))

    weight_bytes = sum(int(a.size) * a.dtype.itemsize
                       for a in (w784, w256, w128, w8, b))
    flops_per_row = 2 * (IN_DIM * H1 + H1 * (H2 + 128) + H2 * L2
                         + LATENT_DIM * H2 + H2 * L2 + LATENT_DIM * H2
                         + H2 * H1 + H1 * IN_DIM)
    cost = pl.CostEstimate(
        flops=int(Bp) * flops_per_row,
        transcendentals=int(Bp) * (IN_DIM + 5 * L2),
        bytes_accessed=weight_bytes + int(Bp) * (2 * IN_DIM + L2) * 4,
    )

    out = pl.pallas_call(
        _ladder_vae_kernel,
        out_shape=jax.ShapeDtypeStruct((Bp, IN_DIM), jnp.float32),
        grid=(Bp // tb,),
        in_specs=[batch_spec(IN_DIM), batch_spec(L2),
                  const_spec(w784), const_spec(w256), const_spec(w128),
                  const_spec(w8), const_spec(b)],
        out_specs=pl.BlockSpec((tb, IN_DIM), lambda i: (i, 0)),
        compiler_params=pltpu.CompilerParams(
            dimension_semantics=("parallel",)),   # shards batch steps on v7x
        cost_estimate=cost,
    )(x_flat, eps, w784, w256, w128, w8, b)

    return out[:B].reshape(B, IMG_C, IMG_H, IMG_W)


# ---------------------------- parameter init ---------------------------------

def _kaiming_normal(key, shape):
    # nn.init.kaiming_normal_(mode='fan_in', nonlinearity='relu') for nn.Linear
    # with weights stored (in_features, out_features): std = sqrt(2 / fan_in).
    return (jax.random.normal(key, shape, jnp.float32)
            * jnp.float32(jnp.sqrt(2.0 / shape[0])))


def init_params(key):
    shapes = {
        "we1_w": (IN_DIM, H1),     # x   -> d1                (bottom-up 1)
        "we2_w": (H1, H2),         # d1  -> d2                (bottom-up 2)
        "wq2_w": (H2, L2),         # d2  -> [mu2 | logvar2]   (top posterior)
        "wt1_w": (LATENT_DIM, H2), # z2  -> t1                (top-down det.)
        "wp1_w": (H2, L2),         # t1  -> [mu_p1 | lv_p1]   (prior for z1)
        "wq1_w": (H1, L2),         # d1  -> [mu_d1 | lv_d1]   (bottom-up lik.)
        "wd0_w": (LATENT_DIM, H2), # z1  -> u                 (decoder combine)
        "wd1_w": (H2, H1),         # u   -> h
        "wd2_w": (H1, IN_DIM),     # h   -> x_hat logits
    }
    names = list(shapes)
    keys = jax.random.split(key, len(names))
    w = {n: _kaiming_normal(k, shapes[n]) for n, k in zip(names, keys)}

    def pad_cols(a, width):
        return jnp.pad(a, ((0, 0), (0, width - a.shape[1])))

    bf16 = jnp.bfloat16
    w784 = w["we1_w"].astype(bf16)                               # (784, 256)
    w256 = jnp.concatenate(
        [w["we2_w"], pad_cols(w["wq1_w"], 128), w["wd2_w"]],
        axis=1).astype(bf16)                                     # (256, 1040)
    w128 = jnp.concatenate(
        [pad_cols(w["wq2_w"], 128), pad_cols(w["wp1_w"], 128), w["wd1_w"]],
        axis=1).astype(bf16)                                     # (128, 512)
    w8 = jnp.concatenate([w["wt1_w"], w["wd0_w"]], axis=1).astype(bf16)  # (8, 256)
    # All nine biases packed flat at 128-aligned offsets, zero-initialized.
    biases = jnp.zeros((1, BIAS_TOTAL), jnp.float32)
    return {"w784": w784, "w256": w256, "w128": w128, "w8": w8, "b": biases}


# --------------------------------- main ---------------------------------------

if __name__ == "__main__":
    key = jax.random.PRNGKey(0)
    kx, ke1, ke2, kp = jax.random.split(key, 4)
    B = 2
    x = jax.random.uniform(kx, (B, IMG_C, IMG_H, IMG_W), jnp.float32)  # MNIST-like
    # TODO(synk): torch.distributions.Normal rsample replaced by deterministic
    # externally supplied standard-normal draws (one per ladder level).
    eps1 = jax.random.normal(ke1, (B, LATENT_DIM), jnp.float32)
    eps2 = jax.random.normal(ke2, (B, LATENT_DIM), jnp.float32)
    params = init_params(kp)

    out = jax.jit(ladder_vae_forward)(params, x, eps1, eps2)
    jax.block_until_ready(out)
    assert out.shape == (B, IMG_C, IMG_H, IMG_W) and out.dtype == jnp.float32
    assert bool(jnp.all(jnp.isfinite(out)))
    assert bool(jnp.all((out >= 0.0) & (out <= 1.0)))
    print("KERNEL_OK")
</pallas_src>

<mosaic_0001>
module attributes {stable_mosaic.version = 11 : i64} {
  func.func @_ladder_vae_kernel(%arg0: i32, %arg1: memref<2x784xf32, #tpu.memory_space<vmem>>, %arg2: memref<2x16xf32, #tpu.memory_space<vmem>>, %arg3: memref<784x256xbf16, #tpu.memory_space<vmem>>, %arg4: memref<256x1040xbf16, #tpu.memory_space<vmem>>, %arg5: memref<128x512xbf16, #tpu.memory_space<vmem>>, %arg6: memref<8x256xbf16, #tpu.memory_space<vmem>>, %arg7: memref<1x2176xf32, #tpu.memory_space<vmem>>, %arg8: memref<2x784xf32, #tpu.memory_space<vmem>>) attributes {dimension_semantics = [#tpu.dimension_semantics<parallel>], iteration_bounds = array<i64: 1>, scalar_prefetch = 0 : i64, scratch_operands = 0 : i64, tpu.core_type = #tpu.core_type<tc>, window_params = [{transform_indices = @transform_0, window_bounds = array<i64: 2, 784>}, {transform_indices = @transform_1, window_bounds = array<i64: 2, 16>}, {pipeline_mode = #tpu.pipeline_mode<synchronous>, transform_indices = @transform_2, window_bounds = array<i64: 784, 256>}, {pipeline_mode = #tpu.pipeline_mode<synchronous>, transform_indices = @transform_3, window_bounds = array<i64: 256, 1040>}, {pipeline_mode = #tpu.pipeline_mode<synchronous>, transform_indices = @transform_4, window_bounds = array<i64: 128, 512>}, {pipeline_mode = #tpu.pipeline_mode<synchronous>, transform_indices = @transform_5, window_bounds = array<i64: 8, 256>}, {pipeline_mode = #tpu.pipeline_mode<synchronous>, transform_indices = @transform_6, window_bounds = array<i64: 1, 2176>}, {transform_indices = @transform_7, window_bounds = array<i64: 2, 784>}]} {
    %c0 = arith.constant 0 : index
    %c0_0 = arith.constant 0 : index
    %0 = vector.load %arg1[%c0, %c0_0] : memref<2x784xf32, #tpu.memory_space<vmem>>, vector<2x784xf32>
    %1 = arith.truncf %0 : vector<2x784xf32> to vector<2x784xbf16>
    %c0_1 = arith.constant 0 : index
    %c0_2 = arith.constant 0 : index
    %2 = vector.load %arg3[%c0_1, %c0_2] : memref<784x256xbf16, #tpu.memory_space<vmem>>, vector<784x256xbf16>
    %cst = arith.constant dense<0.000000e+00> : vector<2x256xf32>
    %3 = tpu.matmul %1, %2, %cst {dimension_numbers = #tpu.dot_dimension_numbers<[1], [0], [0], [1], [0, 0, 1, 1], [], []>} : vector<2x784xbf16>, vector<784x256xbf16>, vector<2x256xf32> -> vector<2x256xf32>
    %c0_3 = arith.constant 0 : index
    %c0_4 = arith.constant 0 : index
    %4 = vector.load %arg7[%c0_3, %c0_4] : memref<1x2176xf32, #tpu.memory_space<vmem>>, vector<1x256xf32>
    %5 = vector.broadcast %4 : vector<1x256xf32> to vector<2x256xf32>
    %6 = arith.addf %3, %5 : vector<2x256xf32>
    %cst_5 = arith.constant 0.000000e+00 : f32
    %7 = vector.broadcast %cst_5 : f32 to vector<2x256xf32>
    %8 = arith.maximumf %6, %7 : vector<2x256xf32>
    %9 = arith.truncf %8 : vector<2x256xf32> to vector<2x256xbf16>
    %c0_6 = arith.constant 0 : index
    %c0_7 = arith.constant 0 : index
    %10 = vector.load %arg4[%c0_6, %c0_7] : memref<256x1040xbf16, #tpu.memory_space<vmem>>, vector<256x256xbf16>
    %cst_8 = arith.constant dense<0.000000e+00> : vector<2x256xf32>
    %11 = tpu.matmul %9, %10, %cst_8 {dimension_numbers = #tpu.dot_dimension_numbers<[1], [0], [0], [1], [0, 0, 1, 1], [], []>} : vector<2x256xbf16>, vector<256x256xbf16>, vector<2x256xf32> -> vector<2x256xf32>
    %12 = vector.extract_strided_slice %11 {offsets = [0, 0], sizes = [2, 128], strides = [1, 1]} : vector<2x256xf32> to vector<2x128xf32>
    %c0_9 = arith.constant 0 : index
    %c256 = arith.constant 256 : index
    %13 = vector.load %arg7[%c0_9, %c256] : memref<1x2176xf32, #tpu.memory_space<vmem>>, vector<1x128xf32>
    %14 = vector.broadcast %13 : vector<1x128xf32> to vector<2x128xf32>
    %15 = arith.addf %12, %14 : vector<2x128xf32>
    %cst_10 = arith.constant 0.000000e+00 : f32
    %16 = vector.broadcast %cst_10 : f32 to vector<2x128xf32>
    %17 = arith.maximumf %15, %16 : vector<2x128xf32>
    %18 = vector.extract_strided_slice %11 {offsets = [0, 128], sizes = [2, 16], strides = [1, 1]} : vector<2x256xf32> to vector<2x16xf32>
    %c0_11 = arith.constant 0 : index
    %c768 = arith.constant 768 : index
    %19 = vector.load %arg7[%c0_11, %c768] : memref<1x2176xf32, #tpu.memory_space<vmem>>, vector<1x16xf32>
    %20 = vector.broadcast %19 : vector<1x16xf32> to vector<2x16xf32>
    %21 = arith.addf %18, %20 : vector<2x16xf32>
    %22 = arith.truncf %17 : vector<2x128xf32> to vector<2x128xbf16>
    %c0_12 = arith.constant 0 : index
    %c0_13 = arith.constant 0 : index
    %23 = vector.load %arg5[%c0_12, %c0_13] : memref<128x512xbf16, #tpu.memory_space<vmem>>, vector<128x16xbf16>
    %cst_14 = arith.constant dense<0.000000e+00> : vector<2x16xf32>
    %24 = tpu.matmul %22, %23, %cst_14 {dimension_numbers = #tpu.dot_dimension_numbers<[1], [0], [0], [1], [0, 0, 1, 1], [], []>} : vector<2x128xbf16>, vector<128x16xbf16>, vector<2x16xf32> -> vector<2x16xf32>
    %c0_15 = arith.constant 0 : index
    %c384 = arith.constant 384 : index
    %25 = vector.load %arg7[%c0_15, %c384] : memref<1x2176xf32, #tpu.memory_space<vmem>>, vector<1x16xf32>
    %26 = vector.broadcast %25 : vector<1x16xf32> to vector<2x16xf32>
    %27 = arith.addf %24, %26 : vector<2x16xf32>
    %28 = vector.extract_strided_slice %27 {offsets = [0, 0], sizes = [2, 8], strides = [1, 1]} : vector<2x16xf32> to vector<2x8xf32>
    %29 = vector.extract_strided_slice %27 {offsets = [0, 8], sizes = [2, 8], strides = [1, 1]} : vector<2x16xf32> to vector<2x8xf32>
    %cst_16 = arith.constant 5.000000e-01 : f32
    %30 = vector.broadcast %cst_16 : f32 to vector<2x8xf32>
    %31 = arith.mulf %30, %29 : vector<2x8xf32>
    %32 = math.exp %31 : vector<2x8xf32>
    %c0_17 = arith.constant 0 : index
    %c8 = arith.constant 8 : index
    %33 = vector.load %arg2[%c0_17, %c8] : memref<2x16xf32, #tpu.memory_space<vmem>>, vector<2x8xf32>
    %34 = arith.mulf %32, %33 : vector<2x8xf32>
    %35 = arith.addf %28, %34 : vector<2x8xf32>
    %36 = arith.truncf %35 : vector<2x8xf32> to vector<2x8xbf16>
    %c0_18 = arith.constant 0 : index
    %c0_19 = arith.constant 0 : index
    %37 = vector.load %arg6[%c0_18, %c0_19] : memref<8x256xbf16, #tpu.memory_space<vmem>>, vector<8x128xbf16>
    %cst_20 = arith.constant dense<0.000000e+00> : vector<2x128xf32>
    %38 = tpu.matmul %36, %37, %cst_20 {dimension_numbers = #tpu.dot_dimension_numbers<[1], [0], [0], [1], [0, 0, 1, 1], [], []>} : vector<2x8xbf16>, vector<8x128xbf16>, vector<2x128xf32> -> vector<2x128xf32>
    %c0_21 = arith.constant 0 : index
    %c512 = arith.constant 512 : index
    %39 = vector.load %arg7[%c0_21, %c512] : memref<1x2176xf32, #tpu.memory_space<vmem>>, vector<1x128xf32>
    %40 = vector.broadcast %39 : vector<1x128xf32> to vector<2x128xf32>
    %41 = arith.addf %38, %40 : vector<2x128xf32>
    %cst_22 = arith.constant 0.000000e+00 : f32
    %42 = vector.broadcast %cst_22 : f32 to vector<2x128xf32>
    %43 = arith.maximumf %41, %42 : vector<2x128xf32>
    %44 = arith.truncf %43 : vector<2x128xf32> to vector<2x128xbf16>
    %c0_23 = arith.constant 0 : index
    %c128 = arith.constant 128 : index
    %45 = vector.load %arg5[%c0_23, %c128] : memref<128x512xbf16, #tpu.memory_space<vmem>>, vector<128x16xbf16>
    %cst_24 = arith.constant dense<0.000000e+00> : vector<2x16xf32>
    %46 = tpu.matmul %44, %45, %cst_24 {dimension_numbers = #tpu.dot_dimension_numbers<[1], [0], [0], [1], [0, 0, 1, 1], [], []>} : vector<2x128xbf16>, vector<128x16xbf16>, vector<2x16xf32> -> vector<2x16xf32>
    %c0_25 = arith.constant 0 : index
    %c640 = arith.constant 640 : index
    %47 = vector.load %arg7[%c0_25, %c640] : memref<1x2176xf32, #tpu.memory_space<vmem>>, vector<1x16xf32>
    %48 = vector.broadcast %47 : vector<1x16xf32> to vector<2x16xf32>
    %49 = arith.addf %46, %48 : vector<2x16xf32>
    %50 = vector.extract_strided_slice %49 {offsets = [0, 0], sizes = [2, 8], strides = [1, 1]} : vector<2x16xf32> to vector<2x8xf32>
    %51 = vector.extract_strided_slice %49 {offsets = [0, 8], sizes = [2, 8], strides = [1, 1]} : vector<2x16xf32> to vector<2x8xf32>
    %52 = vector.extract_strided_slice %21 {offsets = [0, 0], sizes = [2, 8], strides = [1, 1]} : vector<2x16xf32> to vector<2x8xf32>
    %53 = vector.extract_strided_slice %21 {offsets = [0, 8], sizes = [2, 8], strides = [1, 1]} : vector<2x16xf32> to vector<2x8xf32>
    %cst_26 = arith.constant 0.000000e+00 : f32
    %54 = vector.broadcast %cst_26 : f32 to vector<2x8xf32>
    %55 = arith.subf %54, %51 : vector<2x8xf32>
    %56 = math.exp %55 : vector<2x8xf32>
    %cst_27 = arith.constant 0.000000e+00 : f32
    %57 = vector.broadcast %cst_27 : f32 to vector<2x8xf32>
    %58 = arith.subf %57, %53 : vector<2x8xf32>
    %59 = math.exp %58 : vector<2x8xf32>
    %60 = arith.addf %56, %59 : vector<2x8xf32>
    %61 = tpu.reciprocal %60 {approx = true} : vector<2x8xf32> -> vector<2x8xf32>
    %62 = math.rsqrt %60 : vector<2x8xf32>
    %63 = arith.mulf %50, %56 : vector<2x8xf32>
    %64 = arith.mulf %52, %59 : vector<2x8xf32>
    %65 = arith.addf %63, %64 : vector<2x8xf32>
    %66 = arith.mulf %65, %61 : vector<2x8xf32>
    %c0_28 = arith.constant 0 : index
    %c0_29 = arith.constant 0 : index
    %67 = vector.load %arg2[%c0_28, %c0_29] : memref<2x16xf32, #tpu.memory_space<vmem>>, vector<2x8xf32>
    %68 = arith.mulf %62, %67 : vector<2x8xf32>
    %69 = arith.addf %66, %68 : vector<2x8xf32>
    %70 = arith.truncf %69 : vector<2x8xf32> to vector<2x8xbf16>
    %c0_30 = arith.constant 0 : index
    %c128_31 = arith.constant 128 : index
    %71 = vector.load %arg6[%c0_30, %c128_31] : memref<8x256xbf16, #tpu.memory_space<vmem>>, vector<8x128xbf16>
    %cst_32 = arith.constant dense<0.000000e+00> : vector<2x128xf32>
    %72 = tpu.matmul %70, %71, %cst_32 {dimension_numbers = #tpu.dot_dimension_numbers<[1], [0], [0], [1], [0, 0, 1, 1], [], []>} : vector<2x8xbf16>, vector<8x128xbf16>, vector<2x128xf32> -> vector<2x128xf32>
    %c0_33 = arith.constant 0 : index
    %c896 = arith.constant 896 : index
    %73 = vector.load %arg7[%c0_33, %c896] : memref<1x2176xf32, #tpu.memory_space<vmem>>, vector<1x128xf32>
    %74 = vector.broadcast %73 : vector<1x128xf32> to vector<2x128xf32>
    %75 = arith.addf %72, %74 : vector<2x128xf32>
    %76 = arith.addf %75, %43 : vector<2x128xf32>
    %cst_34 = arith.constant 0.000000e+00 : f32
    %77 = vector.broadcast %cst_34 : f32 to vector<2x128xf32>
    %78 = arith.maximumf %76, %77 : vector<2x128xf32>
    %79 = arith.truncf %78 : vector<2x128xf32> to vector<2x128xbf16>
    %c0_35 = arith.constant 0 : index
    %c256_36 = arith.constant 256 : index
    %80 = vector.load %arg5[%c0_35, %c256_36] : memref<128x512xbf16, #tpu.memory_space<vmem>>, vector<128x256xbf16>
    %cst_37 = arith.constant dense<0.000000e+00> : vector<2x256xf32>
    %81 = tpu.matmul %79, %80, %cst_37 {dimension_numbers = #tpu.dot_dimension_numbers<[1], [0], [0], [1], [0, 0, 1, 1], [], []>} : vector<2x128xbf16>, vector<128x256xbf16>, vector<2x256xf32> -> vector<2x256xf32>
    %c0_38 = arith.constant 0 : index
    %c1024 = arith.constant 1024 : index
    %82 = vector.load %arg7[%c0_38, %c1024] : memref<1x2176xf32, #tpu.memory_space<vmem>>, vector<1x256xf32>
    %83 = vector.broadcast %82 : vector<1x256xf32> to vector<2x256xf32>
    %84 = arith.addf %81, %83 : vector<2x256xf32>
    %cst_39 = arith.constant 0.000000e+00 : f32
    %85 = vector.broadcast %cst_39 : f32 to vector<2x256xf32>
    %86 = arith.maximumf %84, %85 : vector<2x256xf32>
    %87 = arith.truncf %86 : vector<2x256xf32> to vector<2x256xbf16>
    %c0_40 = arith.constant 0 : index
    %c256_41 = arith.constant 256 : index
    %88 = vector.load %arg4[%c0_40, %c256_41] : memref<256x1040xbf16, #tpu.memory_space<vmem>>, vector<256x784xbf16>
    %cst_42 = arith.constant dense<0.000000e+00> : vector<2x784xf32>
    %89 = tpu.matmul %87, %88, %cst_42 {dimension_numbers = #tpu.dot_dimension_numbers<[1], [0], [0], [1], [0, 0, 1, 1], [], []>} : vector<2x256xbf16>, vector<256x784xbf16>, vector<2x784xf32> -> vector<2x784xf32>
    %c0_43 = arith.constant 0 : index
    %c1280 = arith.constant 1280 : index
    %90 = vector.load %arg7[%c0_43, %c1280] : memref<1x2176xf32, #tpu.memory_space<vmem>>, vector<1x784xf32>
    %91 = vector.broadcast %90 : vector<1x784xf32> to vector<2x784xf32>
    %92 = arith.addf %89, %91 : vector<2x784xf32>
    %93 = arith.negf %92 : vector<2x784xf32>
    %94 = math.exp %93 : vector<2x784xf32>
    %cst_44 = arith.constant 1.000000e+00 : f32
    %95 = vector.broadcast %cst_44 : f32 to vector<2x784xf32>
    %96 = arith.addf %95, %94 : vector<2x784xf32>
    %97 = arith.divf %95, %96 : vector<2x784xf32>
    %c0_45 = arith.constant 0 : index
    %c0_46 = arith.constant 0 : index
    %98 = vector.load %arg8[%c0_45, %c0_46] : memref<2x784xf32, #tpu.memory_space<vmem>>, vector<2x784xf32>
    tpu.vector_store %arg8[%c0_45, %c0_46], %97 {strides = array<i32>} : memref<2x784xf32, #tpu.memory_space<vmem>>, vector<2x784xf32>,
    return
  }
  func.func @transform_0(%arg0: i32) -> (i32, i32) {
    %c0_i32 = arith.constant 0 : i32
    %c0_i32_0 = arith.constant 0 : i32
    return %arg0, %c0_i32 : i32, i32
  }
  func.func @transform_1(%arg0: i32) -> (i32, i32) {
    %c0_i32 = arith.constant 0 : i32
    %c0_i32_0 = arith.constant 0 : i32
    return %arg0, %c0_i32 : i32, i32
  }
  func.func @transform_2(%arg0: i32) -> (i32, i32) {
    %c0_i32 = arith.constant 0 : i32
    %c0_i32_0 = arith.constant 0 : i32
    %c0_i32_1 = arith.constant 0 : i32
    return %c0_i32, %c0_i32_0 : i32, i32
  }
  func.func @transform_3(%arg0: i32) -> (i32, i32) {
    %c0_i32 = arith.constant 0 : i32
    %c0_i32_0 = arith.constant 0 : i32
    %c0_i32_1 = arith.constant 0 : i32
    return %c0_i32, %c0_i32_0 : i32, i32
  }
  func.func @transform_4(%arg0: i32) -> (i32, i32) {
    %c0_i32 = arith.constant 0 : i32
    %c0_i32_0 = arith.constant 0 : i32
    %c0_i32_1 = arith.constant 0 : i32
    return %c0_i32, %c0_i32_0 : i32, i32
  }
  func.func @transform_5(%arg0: i32) -> (i32, i32) {
    %c0_i32 = arith.constant 0 : i32
    %c0_i32_0 = arith.constant 0 : i32
    %c0_i32_1 = arith.constant 0 : i32
    return %c0_i32, %c0_i32_0 : i32, i32
  }
  func.func @transform_6(%arg0: i32) -> (i32, i32) {
    %c0_i32 = arith.constant 0 : i32
    %c0_i32_0 = arith.constant 0 : i32
    %c0_i32_1 = arith.constant 0 : i32
    return %c0_i32, %c0_i32_0 : i32, i32
  }
  func.func @transform_7(%arg0: i32) -> (i32, i32) {
    %c0_i32 = arith.constant 0 : i32
    %c0_i32_0 = arith.constant 0 : i32
    return %arg0, %c0_i32 : i32, i32
  }
}

</mosaic_0001>

<llo_original>
// kernel: ladder_vae_forward.1
$region0: #{ladder_vae_forward.1}
  #allocation0 [shape = 'u32[]', space=smem, size = 0x4, offset = 0x4, fixed_abs, tag = 'smem constant byte address 0x4 - core index']
  #allocation1 [shape = 'u32[144,128]{1,0:T(1,128)}', space=vmem, size = 0x12000, scoped, tag = 'internal scratch']
  %s0 = inlined_call_operand.vmem [shape: f32[2,784], index: 0, kind: input, shape index: {}]
  %s1 = inlined_call_operand.vmem [shape: f32[2,16], index: 1, kind: input, shape index: {}]
  %s2 = inlined_call_operand.vmem [shape: bf16[784,256], index: 2, kind: input, shape index: {}]
  %s3 = inlined_call_operand.vmem [shape: bf16[256,1040], index: 3, kind: input, shape index: {}]
  %s4 = inlined_call_operand.vmem [shape: bf16[128,512], index: 4, kind: input, shape index: {}]
  %s5 = inlined_call_operand.vmem [shape: bf16[8,256], index: 5, kind: input, shape index: {}]
  %s6 = inlined_call_operand.vmem [shape: f32[1,2176], index: 6, kind: input, shape index: {}]
  %s7 = inlined_call_operand.vmem [shape: f32[2,784], index: 7, kind: output, shape index: {}]
  %s8 = sld [smem:[#allocation0]]
  $region38: #{ladder_vae_forward.1} parent=0
    _
  %s10 = ssub.s32 1, %s8
  %s11 = scalar_select 0, %s10, %s8
  // Predicated region
  $region2: #{ladder_vae_forward.1} parent=0 // pred_check
    _
  $region3: #{ladder_vae_forward.1} parent=0 // pred_check_branch
    %13 = sbr.rel (0) target = $region5
  $region4: #{ladder_vae_forward.1} parent=0 // pred_region
    _
  $region5: #{ladder_vae_forward.1} parent=0 // pred_fallthru
    _
  // Predicated region
  $region6: #{ladder_vae_forward.1} parent=0 // pred_check
    _
  $region7: #{ladder_vae_forward.1} parent=0 // pred_check_branch
    %15 = sbr.rel (0) target = $region9
  $region8: #{ladder_vae_forward.1} parent=0 // pred_region
    _
  $region9: #{ladder_vae_forward.1} parent=0 // pred_fallthru
    _
  // Predicated region
  $region10: #{ladder_vae_forward.1} parent=0 // pred_check
    _
  $region11: #{ladder_vae_forward.1} parent=0 // pred_check_branch
    %17 = sbr.rel (0) target = $region13
  $region12: #{ladder_vae_forward.1} parent=0 // pred_region
    _
  $region13: #{ladder_vae_forward.1} parent=0 // pred_fallthru
    _
  // Predicated region
  $region14: #{ladder_vae_forward.1} parent=0 // pred_check
    _
  $region15: #{ladder_vae_forward.1} parent=0 // pred_check_branch
    %19 = sbr.rel (0) target = $region17
  $region16: #{ladder_vae_forward.1} parent=0 // pred_region
    _
  $region17: #{ladder_vae_forward.1} parent=0 // pred_fallthru
    _
  // Predicated region
  $region18: #{ladder_vae_forward.1} parent=0 // pred_check
    _
  $region19: #{ladder_vae_forward.1} parent=0 // pred_check_branch
    %21 = sbr.rel (0) target = $region21
  $region20: #{ladder_vae_forward.1} parent=0 // pred_region
    _
  $region21: #{ladder_vae_forward.1} parent=0 // pred_fallthru
    _
  // Predicated region
  $region22: #{ladder_vae_forward.1} parent=0 // pred_check
    _
  $region23: #{ladder_vae_forward.1} parent=0 // pred_check_branch
    %23 = sbr.rel (0) target = $region25
  $region24: #{ladder_vae_forward.1} parent=0 // pred_region
    _
  $region25: #{ladder_vae_forward.1} parent=0 // pred_fallthru
    _
  // Predicated region
  $region26: #{ladder_vae_forward.1} parent=0 // pred_check
    _
  $region27: #{ladder_vae_forward.1} parent=0 // pred_check_branch
    %25 = sbr.rel (0) target = $region29
  $region28: #{ladder_vae_forward.1} parent=0 // pred_region
    _
  $region29: #{ladder_vae_forward.1} parent=0 // pred_fallthru
    _
  %v27 = vld [vmem:[%s0] sm:$0xff]
  %v28 = vld [vmem:[%s0 + $0x8] sm:$0x3f]
  %v31 = vcombine.high %v27, %v27
  %v33 = vunpack.c.l.s4 1983009808
  %v34 = vunpack.c.0.s8 %v33
  %v35 = vlaneseq
  %v36 = vshrl.u32 %v35, 7
  %v37 = vsub.s32 %v34, %v36
  %v38 = vrot.slane %v27, %v37
  %v40 = vunpack.c.l.s4 1983009808
  %v41 = vunpack.c.0.s8 %v40
  %v42 = vlaneseq
  %v43 = vshrl.u32 %v42, 7
  %v44 = vsub.s32 %v41, %v43
  %v45 = vrot.slane %v31, %v44
  %v46 = vcombine.high %v38, %v38
  %v47 = vcombine.high %v45, %v45
  %v48 = vcombine.high %v28, %v28
  %v50 = vunpack.c.l.s4 1983009808
  %v51 = vunpack.c.0.s8 %v50
  %v52 = vlaneseq
  %v53 = vshrl.u32 %v52, 7
  %v54 = vsub.s32 %v51, %v53
  %v55 = vrot.slane %v28, %v54
  %v57 = vunpack.c.l.s4 1983009808
  %v58 = vunpack.c.0.s8 %v57
  %v59 = vlaneseq
  %v60 = vshrl.u32 %v59, 7
  %v61 = vsub.s32 %v58, %v60
  %v62 = vrot.slane %v48, %v61
  %v63 = vcombine.high %v55, %v55
  %v71 = vpack.c.bf16 %v38, %v38
  %v72 = vpack.c.bf16 %v46, %v46
  %v73 = vpack.c.bf16 %v45, %v45
  %v74 = vpack.c.bf16 %v47, %v47
  %v75 = vpack.c.bf16 %v55, %v55
  %v76 = vpack.c.bf16 %v63, %v63
  %v77 = vpack.c.bf16 %v62, %v62
  %v78 = vld [vmem:[%s2] sm:$0xff]
  %v79 = vld [vmem:[%s2 + $0x8] sm:$0xff]
  %v80 = vld [vmem:[%s2 + $0x10] sm:$0xff]
  %v81 = vld [vmem:[%s2 + $0x18] sm:$0xff]
  %v82 = vld [vmem:[%s2 + $0x20] sm:$0xff]
  %v83 = vld [vmem:[%s2 + $0x28] sm:$0xff]
  %v84 = vld [vmem:[%s2 + $0x30] sm:$0xff]
  %v85 = vld [vmem:[%s2 + $0x38] sm:$0xff]
  %v86 = vld [vmem:[%s2 + $0x40] sm:$0xff]
  %v87 = vld [vmem:[%s2 + $0x48] sm:$0xff]
  %v88 = vld [vmem:[%s2 + $0x50] sm:$0xff]
  %v89 = vld [vmem:[%s2 + $0x58] sm:$0xff]
  %v90 = vld [vmem:[%s2 + $0x60] sm:$0xff]
  %v91 = vld [vmem:[%s2 + $0x68] sm:$0xff]
  %v92 = vld [vmem:[%s2 + $0x70] sm:$0xff]
  %v93 = vld [vmem:[%s2 + $0x78] sm:$0xff]
  %v94 = vld [vmem:[%s2 + $0x80] sm:$0xff]
  %v95 = vld [vmem:[%s2 + $0x88] sm:$0xff]
  %v96 = vld [vmem:[%s2 + $0x90] sm:$0xff]
  %v97 = vld [vmem:[%s2 + $0x98] sm:$0xff]
  %v98 = vld [vmem:[%s2 + $0xa0] sm:$0xff]
  %v99 = vld [vmem:[%s2 + $0xa8] sm:$0xff]
  %v100 = vld [vmem:[%s2 + $0xb0] sm:$0xff]
  %v101 = vld [vmem:[%s2 + $0xb8] sm:$0xff]
  %v102 = vld [vmem:[%s2 + $0xc0] sm:$0xff]
  %v103 = vld [vmem:[%s2 + $0xc8] sm:$0xff]
  %v104 = vld [vmem:[%s2 + $0xd0] sm:$0xff]
  %v105 = vld [vmem:[%s2 + $0xd8] sm:$0xff]
  %v106 = vld [vmem:[%s2 + $0xe0] sm:$0xff]
  %v107 = vld [vmem:[%s2 + $0xe8] sm:$0xff]
  %v108 = vld [vmem:[%s2 + $0xf0] sm:$0xff]
  %v109 = vld [vmem:[%s2 + $0xf8] sm:$0xff]
  %v110 = vld [vmem:[%s2 + $0x100] sm:$0xff]
  %v111 = vld [vmem:[%s2 + $0x108] sm:$0xff]
  %v112 = vld [vmem:[%s2 + $0x110] sm:$0xff]
  %v113 = vld [vmem:[%s2 + $0x118] sm:$0xff]
  %v114 = vld [vmem:[%s2 + $0x120] sm:$0xff]
  %v115 = vld [vmem:[%s2 + $0x128] sm:$0xff]
  %v116 = vld [vmem:[%s2 + $0x130] sm:$0xff]
  %v117 = vld [vmem:[%s2 + $0x138] sm:$0xff]
  %v118 = vld [vmem:[%s2 + $0x140] sm:$0xff]
  %v119 = vld [vmem:[%s2 + $0x148] sm:$0xff]
  %v120 = vld [vmem:[%s2 + $0x150] sm:$0xff]
  %v121 = vld [vmem:[%s2 + $0x158] sm:$0xff]
  %v122 = vld [vmem:[%s2 + $0x160] sm:$0xff]
  %v123 = vld [vmem:[%s2 + $0x168] sm:$0xff]
  %v124 = vld [vmem:[%s2 + $0x170] sm:$0xff]
  %v125 = vld [vmem:[%s2 + $0x178] sm:$0xff]
  %v126 = vld [vmem:[%s2 + $0x180] sm:$0xff]
  %v127 = vld [vmem:[%s2 + $0x188] sm:$0xff]
  %v128 = vld [vmem:[%s2 + $0x190] sm:$0xff]
  %v129 = vld [vmem:[%s2 + $0x198] sm:$0xff]
  %v130 = vld [vmem:[%s2 + $0x1a0] sm:$0xff]
  %v131 = vld [vmem:[%s2 + $0x1a8] sm:$0xff]
  %v132 = vld [vmem:[%s2 + $0x1b0] sm:$0xff]
  %v133 = vld [vmem:[%s2 + $0x1b8] sm:$0xff]
  %v134 = vld [vmem:[%s2 + $0x1c0] sm:$0xff]
  %v135 = vld [vmem:[%s2 + $0x1c8] sm:$0xff]
  %v136 = vld [vmem:[%s2 + $0x1d0] sm:$0xff]
  %v137 = vld [vmem:[%s2 + $0x1d8] sm:$0xff]
  %v138 = vld [vmem:[%s2 + $0x1e0] sm:$0xff]
  %v139 = vld [vmem:[%s2 + $0x1e8] sm:$0xff]
  %v140 = vld [vmem:[%s2 + $0x1f0] sm:$0xff]
  %v141 = vld [vmem:[%s2 + $0x1f8] sm:$0xff]
  %v142 = vld [vmem:[%s2 + $0x200] sm:$0xff]
  %v143 = vld [vmem:[%s2 + $0x208] sm:$0xff]
  %v144 = vld [vmem:[%s2 + $0x210] sm:$0xff]
  %v145 = vld [vmem:[%s2 + $0x218] sm:$0xff]
  %v146 = vld [vmem:[%s2 + $0x220] sm:$0xff]
  %v147 = vld [vmem:[%s2 + $0x228] sm:$0xff]
  %v148 = vld [vmem:[%s2 + $0x230] sm:$0xff]
  %v149 = vld [vmem:[%s2 + $0x238] sm:$0xff]
  %v150 = vld [vmem:[%s2 + $0x240] sm:$0xff]
  %v151 = vld [vmem:[%s2 + $0x248] sm:$0xff]
  %v152 = vld [vmem:[%s2 + $0x250] sm:$0xff]
  %v153 = vld [vmem:[%s2 + $0x258] sm:$0xff]
  %v154 = vld [vmem:[%s2 + $0x260] sm:$0xff]
  %v155 = vld [vmem:[%s2 + $0x268] sm:$0xff]
  %v156 = vld [vmem:[%s2 + $0x270] sm:$0xff]
  %v157 = vld [vmem:[%s2 + $0x278] sm:$0xff]
  %v158 = vld [vmem:[%s2 + $0x280] sm:$0xff]
  %v159 = vld [vmem:[%s2 + $0x288] sm:$0xff]
  %v160 = vld [vmem:[%s2 + $0x290] sm:$0xff]
  %v161 = vld [vmem:[%s2 + $0x298] sm:$0xff]
  %v162 = vld [vmem:[%s2 + $0x2a0] sm:$0xff]
  %v163 = vld [vmem:[%s2 + $0x2a8] sm:$0xff]
  %v164 = vld [vmem:[%s2 + $0x2b0] sm:$0xff]
  %v165 = vld [vmem:[%s2 + $0x2b8] sm:$0xff]
  %v166 = vld [vmem:[%s2 + $0x2c0] sm:$0xff]
  %v167 = vld [vmem:[%s2 + $0x2c8] sm:$0xff]
  %v168 = vld [vmem:[%s2 + $0x2d0] sm:$0xff]
  %v169 = vld [vmem:[%s2 + $0x2d8] sm:$0xff]
  %v170 = vld [vmem:[%s2 + $0x2e0] sm:$0xff]
  %v171 = vld [vmem:[%s2 + $0x2e8] sm:$0xff]
  %v172 = vld [vmem:[%s2 + $0x2f0] sm:$0xff]
  %v173 = vld [vmem:[%s2 + $0x2f8] sm:$0xff]
  %v174 = vld [vmem:[%s2 + $0x300] sm:$0xff]
  %v175 = vld [vmem:[%s2 + $0x308] sm:$0xff]
  %v176 = vld [vmem:[%s6] sm:$0x3]
  %v178 = vlaneseq
  %v179 = vshrl.u32 %v178, 7
  %v180 = vsub.s32 0, %v179
  %v181 = vrot.slane %v176, %v180
  %v182 = vlaneseq
  %v183 = vshrl.u32 %v182, 7
  %v184 = vsub.s32 1, %v183
  %v185 = vrot.slane %v176, %v184
  %v286 = vunpack.c.l.b16 %v78
  %v287 = vunpack.c.h.b16 %v78
  %v288 = vunpack.c.l.b16 %v79
  %v289 = vunpack.c.h.b16 %v79
  %v290 = vunpack.c.l.b16 %v80
  %v291 = vunpack.c.h.b16 %v80
  %v292 = vunpack.c.l.b16 %v81
  %v293 = vunpack.c.h.b16 %v81
  %v294 = vunpack.c.l.b16 %v82
  %v295 = vunpack.c.h.b16 %v82
  %v296 = vunpack.c.l.b16 %v83
  %v297 = vunpack.c.h.b16 %v83
  %v298 = vunpack.c.l.b16 %v84
  %v299 = vunpack.c.h.b16 %v84
  %v300 = vunpack.c.l.b16 %v85
  %v301 = vunpack.c.h.b16 %v85
  %v302 = vunpack.c.l.b16 %v86
  %v303 = vunpack.c.h.b16 %v86
  %v304 = vunpack.c.l.b16 %v87
  %v305 = vunpack.c.h.b16 %v87
  %v306 = vunpack.c.l.b16 %v88
  %v307 = vunpack.c.h.b16 %v88
  %v308 = vunpack.c.l.b16 %v89
  %v309 = vunpack.c.h.b16 %v89
  %v310 = vunpack.c.l.b16 %v90
  %v311 = vunpack.c.h.b16 %v90
  %v312 = vunpack.c.l.b16 %v91
  %v313 = vunpack.c.h.b16 %v91
  %v314 = vunpack.c.l.b16 %v92
  %v315 = vunpack.c.h.b16 %v92
  %v316 = vunpack.c.l.b16 %v93
  %v317 = vunpack.c.h.b16 %v93
  %v318 = vunpack.c.l.b16 %v94
  %v319 = vunpack.c.h.b16 %v94
  %v320 = vunpack.c.l.b16 %v95
  %v321 = vunpack.c.h.b16 %v95
  %v322 = vunpack.c.l.b16 %v96
  %v323 = vunpack.c.h.b16 %v96
  %v324 = vunpack.c.l.b16 %v97
  %v325 = vunpack.c.h.b16 %v97
  %v326 = vunpack.c.l.b16 %v98
  %v327 = vunpack.c.h.b16 %v98
  %v328 = vunpack.c.l.b16 %v99
  %v329 = vunpack.c.h.b16 %v99
  %v330 = vunpack.c.l.b16 %v100
  %v331 = vunpack.c.h.b16 %v100
  %v332 = vunpack.c.l.b16 %v101
  %v333 = vunpack.c.h.b16 %v101
  %v334 = vunpack.c.l.b16 %v102
  %v335 = vunpack.c.h.b16 %v102
  %v336 = vunpack.c.l.b16 %v103
  %v337 = vunpack.c.h.b16 %v103
  %v338 = vunpack.c.l.b16 %v104
  %v339 = vunpack.c.h.b16 %v104
  %v340 = vunpack.c.l.b16 %v105
  %v341 = vunpack.c.h.b16 %v105
  %v342 = vunpack.c.l.b16 %v106
  %v343 = vunpack.c.h.b16 %v106
  %v344 = vunpack.c.l.b16 %v107
  %v345 = vunpack.c.h.b16 %v107
  %v346 = vunpack.c.l.b16 %v108
  %v347 = vunpack.c.h.b16 %v108
  %v348 = vunpack.c.l.b16 %v109
  %v349 = vunpack.c.h.b16 %v109
  %v350 = vunpack.c.l.b16 %v110
  %v351 = vunpack.c.h.b16 %v110
  %v352 = vunpack.c.l.b16 %v111
  %v353 = vunpack.c.h.b16 %v111
  %v354 = vunpack.c.l.b16 %v112
  %v355 = vunpack.c.h.b16 %v112
  %v356 = vunpack.c.l.b16 %v113
  %v357 = vunpack.c.h.b16 %v113
  %v358 = vunpack.c.l.b16 %v114
  %v359 = vunpack.c.h.b16 %v114
  %v360 = vunpack.c.l.b16 %v115
  %v361 = vunpack.c.h.b16 %v115
  %v362 = vunpack.c.l.b16 %v116
  %v363 = vunpack.c.h.b16 %v116
  %v364 = vunpack.c.l.b16 %v117
  %v365 = vunpack.c.h.b16 %v117
  %v366 = vunpack.c.l.b16 %v118
  %v367 = vunpack.c.h.b16 %v118
  %v368 = vunpack.c.l.b16 %v119
  %v369 = vunpack.c.h.b16 %v119
  %v370 = vunpack.c.l.b16 %v120
  %v371 = vunpack.c.h.b16 %v120
  %v372 = vunpack.c.l.b16 %v121
  %v373 = vunpack.c.h.b16 %v121
  %v374 = vunpack.c.l.b16 %v122
  %v375 = vunpack.c.h.b16 %v122
  %v376 = vunpack.c.l.b16 %v123
  %v377 = vunpack.c.h.b16 %v123
  %v378 = vunpack.c.l.b16 %v124
  %v379 = vunpack.c.h.b16 %v124
  %v380 = vunpack.c.l.b16 %v125
  %v381 = vunpack.c.h.b16 %v125
  %v382 = vunpack.c.l.b16 %v126
  %v383 = vunpack.c.h.b16 %v126
  %v384 = vunpack.c.l.b16 %v127
  %v385 = vunpack.c.h.b16 %v127
  %v386 = vunpack.c.l.b16 %v128
  %v387 = vunpack.c.h.b16 %v128
  %v388 = vunpack.c.l.b16 %v129
  %v389 = vunpack.c.h.b16 %v129
  %v390 = vunpack.c.l.b16 %v130
  %v391 = vunpack.c.h.b16 %v130
  %v392 = vunpack.c.l.b16 %v131
  %v393 = vunpack.c.h.b16 %v131
  %v394 = vunpack.c.l.b16 %v132
  %v395 = vunpack.c.h.b16 %v132
  %v396 = vunpack.c.l.b16 %v133
  %v397 = vunpack.c.h.b16 %v133
  %v398 = vunpack.c.l.b16 %v134
  %v399 = vunpack.c.h.b16 %v134
  %v400 = vunpack.c.l.b16 %v135
  %v401 = vunpack.c.h.b16 %v135
  %v402 = vunpack.c.l.b16 %v136
  %v403 = vunpack.c.h.b16 %v136
  %v404 = vunpack.c.l.b16 %v137
  %v405 = vunpack.c.h.b16 %v137
  %v406 = vunpack.c.l.b16 %v138
  %v407 = vunpack.c.h.b16 %v138
  %v408 = vunpack.c.l.b16 %v139
  %v409 = vunpack.c.h.b16 %v139
  %v410 = vunpack.c.l.b16 %v140
  %v411 = vunpack.c.h.b16 %v140
  %v412 = vunpack.c.l.b16 %v141
  %v413 = vunpack.c.h.b16 %v141
  %v414 = vunpack.c.l.b16 %v142
  %v415 = vunpack.c.h.b16 %v142
  %v416 = vunpack.c.l.b16 %v143
  %v417 = vunpack.c.h.b16 %v143
  %v418 = vunpack.c.l.b16 %v144
  %v419 = vunpack.c.h.b16 %v144
  %v420 = vunpack.c.l.b16 %v145
  %v421 = vunpack.c.h.b16 %v145
  %v422 = vunpack.c.l.b16 %v146
  %v423 = vunpack.c.h.b16 %v146
  %v424 = vunpack.c.l.b16 %v147
  %v425 = vunpack.c.h.b16 %v147
  %v426 = vunpack.c.l.b16 %v148
  %v427 = vunpack.c.h.b16 %v148
  %v428 = vunpack.c.l.b16 %v149
  %v429 = vunpack.c.h.b16 %v149
  %v430 = vunpack.c.l.b16 %v150
  %v431 = vunpack.c.h.b16 %v150
  %v432 = vunpack.c.l.b16 %v151
  %v433 = vunpack.c.h.b16 %v151
  %v434 = vunpack.c.l.b16 %v152
  %v435 = vunpack.c.h.b16 %v152
  %v436 = vunpack.c.l.b16 %v153
  %v437 = vunpack.c.h.b16 %v153
  %v438 = vunpack.c.l.b16 %v154
  %v439 = vunpack.c.h.b16 %v154
  %v440 = vunpack.c.l.b16 %v155
  %v441 = vunpack.c.h.b16 %v155
  %v442 = vunpack.c.l.b16 %v156
  %v443 = vunpack.c.h.b16 %v156
  %v444 = vunpack.c.l.b16 %v157
  %v445 = vunpack.c.h.b16 %v157
  %v446 = vunpack.c.l.b16 %v158
  %v447 = vunpack.c.h.b16 %v158
  %v448 = vunpack.c.l.b16 %v159
  %v449 = vunpack.c.h.b16 %v159
  %v450 = vunpack.c.l.b16 %v160
  %v451 = vunpack.c.h.b16 %v160
  %v452 = vunpack.c.l.b16 %v161
  %v453 = vunpack.c.h.b16 %v161
  %v454 = vunpack.c.l.b16 %v162
  %v455 = vunpack.c.h.b16 %v162
  %v456 = vunpack.c.l.b16 %v163
  %v457 = vunpack.c.h.b16 %v163
  %v458 = vunpack.c.l.b16 %v164
  %v459 = vunpack.c.h.b16 %v164
  %v460 = vunpack.c.l.b16 %v165
  %v461 = vunpack.c.h.b16 %v165
  %v462 = vunpack.c.l.b16 %v166
  %v463 = vunpack.c.h.b16 %v166
  %v464 = vunpack.c.l.b16 %v167
  %v465 = vunpack.c.h.b16 %v167
  %v466 = vunpack.c.l.b16 %v168
  %v467 = vunpack.c.h.b16 %v168
  %v468 = vunpack.c.l.b16 %v169
  %v469 = vunpack.c.h.b16 %v169
  %v470 = vunpack.c.l.b16 %v170
  %v471 = vunpack.c.h.b16 %v170
  %v472 = vunpack.c.l.b16 %v171
  %v473 = vunpack.c.h.b16 %v171
  %v474 = vunpack.c.l.b16 %v172
  %v475 = vunpack.c.h.b16 %v172
  %v476 = vunpack.c.l.b16 %v173
  %v477 = vunpack.c.h.b16 %v173
  %v478 = vunpack.c.l.b16 %v174
  %v479 = vunpack.c.h.b16 %v174
  %v480 = vunpack.c.l.b16 %v175
  %v481 = vunpack.c.h.b16 %v175
  %v482 = vpack.c.b16 %v288, %v286
  %v483 = vpack.c.b16 %v289, %v287
  %v484 = vpack.c.b16 %v292, %v290
  %v485 = vpack.c.b16 %v293, %v291
  %v486 = vpack.c.b16 %v296, %v294
  %v487 = vpack.c.b16 %v297, %v295
  %v488 = vpack.c.b16 %v300, %v298
  %v489 = vpack.c.b16 %v301, %v299
  %v490 = vpack.c.b16 %v304, %v302
  %v491 = vpack.c.b16 %v305, %v303
  %v492 = vpack.c.b16 %v308, %v306
  %v493 = vpack.c.b16 %v309, %v307
  %v494 = vpack.c.b16 %v312, %v310
  %v495 = vpack.c.b16 %v313, %v311
  %v496 = vpack.c.b16 %v316, %v314
  %v497 = vpack.c.b16 %v317, %v315
  %v498 = vpack.c.b16 %v320, %v318
  %v499 = vpack.c.b16 %v321, %v319
  %v500 = vpack.c.b16 %v324, %v322
  %v501 = vpack.c.b16 %v325, %v323
  %v502 = vpack.c.b16 %v328, %v326
  %v503 = vpack.c.b16 %v329, %v327
  %v504 = vpack.c.b16 %v332, %v330
  %v505 = vpack.c.b16 %v333, %v331
  %v506 = vpack.c.b16 %v336, %v334
  %v507 = vpack.c.b16 %v337, %v335
  %v508 = vpack.c.b16 %v340, %v338
  %v509 = vpack.c.b16 %v341, %v339
  %v510 = vpack.c.b16 %v344, %v342
  %v511 = vpack.c.b16 %v345, %v343
  %v512 = vpack.c.b16 %v348, %v346
  %v513 = vpack.c.b16 %v349, %v347
  %v514 = vpack.c.b16 %v352, %v350
  %v515 = vpack.c.b16 %v353, %v351
  %v516 = vpack.c.b16 %v356, %v354
  %v517 = vpack.c.b16 %v357, %v355
  %v518 = vpack.c.b16 %v360, %v358
  %v519 = vpack.c.b16 %v361, %v359
  %v520 = vpack.c.b16 %v364, %v362
  %v521 = vpack.c.b16 %v365, %v363
  %v522 = vpack.c.b16 %v368, %v366
  %v523 = vpack.c.b16 %v369, %v367
  %v524 = vpack.c.b16 %v372, %v370
  %v525 = vpack.c.b16 %v373, %v371
  %v526 = vpack.c.b16 %v376, %v374
  %v527 = vpack.c.b16 %v377, %v375
  %v528 = vpack.c.b16 %v380, %v378
  %v529 = vpack.c.b16 %v381, %v379
  %v530 = vpack.c.b16 %v384, %v382
  %v531 = vpack.c.b16 %v385, %v383
  %v532 = vpack.c.b16 %v388, %v386
  %v533 = vpack.c.b16 %v389, %v387
  %v534 = vpack.c.b16 %v392, %v390
  %v535 = vpack.c.b16 %v393, %v391
  %v536 = vpack.c.b16 %v396, %v394
  %v537 = vpack.c.b16 %v397, %v395
  %v538 = vpack.c.b16 %v400, %v398
  %v539 = vpack.c.b16 %v401, %v399
  %v540 = vpack.c.b16 %v404, %v402
  %v541 = vpack.c.b16 %v405, %v403
  %v542 = vpack.c.b16 %v408, %v406
  %v543 = vpack.c.b16 %v409, %v407
  %v544 = vpack.c.b16 %v412, %v410
  %v545 = vpack.c.b16 %v413, %v411
  %v546 = vpack.c.b16 %v416, %v414
  %v547 = vpack.c.b16 %v417, %v415
  %v548 = vpack.c.b16 %v420, %v418
  %v549 = vpack.c.b16 %v421, %v419
  %v550 = vpack.c.b16 %v424, %v422
  %v551 = vpack.c.b16 %v425, %v423
  %v552 = vpack.c.b16 %v428, %v426
  %v553 = vpack.c.b16 %v429, %v427
  %v554 = vpack.c.b16 %v432, %v430
  %v555 = vpack.c.b16 %v433, %v431
  %v556 = vpack.c.b16 %v436, %v434
  %v557 = vpack.c.b16 %v437, %v435
  %v558 = vpack.c.b16 %v440, %v438
  %v559 = vpack.c.b16 %v441, %v439
  %v560 = vpack.c.b16 %v444, %v442
  %v561 = vpack.c.b16 %v445, %v443
  %v562 = vpack.c.b16 %v448, %v446
  %v563 = vpack.c.b16 %v449, %v447
  %v564 = vpack.c.b16 %v452, %v450
  %v565 = vpack.c.b16 %v453, %v451
  %v566 = vpack.c.b16 %v456, %v454
  %v567 = vpack.c.b16 %v457, %v455
  %v568 = vpack.c.b16 %v460, %v458
  %v569 = vpack.c.b16 %v461, %v459
  %v570 = vpack.c.b16 %v464, %v462
  %v571 = vpack.c.b16 %v465, %v463
  %v572 = vpack.c.b16 %v468, %v466
  %v573 = vpack.c.b16 %v469, %v467
  %v574 = vpack.c.b16 %v472, %v470
  %v575 = vpack.c.b16 %v473, %v471
  %v576 = vpack.c.b16 %v476, %v474
  %v577 = vpack.c.b16 %v477, %v475
  %v578 = vpack.c.b16 %v480, %v478
  %v579 = vpack.c.b16 %v481, %v479
  %vm678 = vcmask 130048
  %v680 = vsel %vm678, %v77, 0
  %682 = vmatprep.subr.bf16.mxu0 %v483
  %683 = vmatpush1.bf16.msra.mxu0 %v482
  %684 = vmatprep.subr.bf16.mxu0 %v485
  %685 = vmatpush1.bf16.msra.mxu0 %v484
  %686 = vmatprep.subr.bf16.mxu0 %v487
  %687 = vmatpush1.bf16.msra.mxu0 %v486
  %688 = vmatprep.subr.bf16.mxu0 %v489
  %689 = vmatpush1.bf16.msra.mxu0 %v488
  %690 = vmatprep.subr.bf16.mxu0 %v491
  %691 = vmatpush1.bf16.msra.mxu0 %v490
  %692 = vmatprep.subr.bf16.mxu0 %v493
  %693 = vmatpush1.bf16.msra.mxu0 %v492
  %694 = vmatprep.subr.bf16.mxu0 %v495
  %695 = vmatpush1.bf16.msra.mxu0 %v494
  %696 = vmatprep.subr.bf16.mxu0 %v497
  %697 = vmatpush1.bf16.msra.mxu0 %v496
  %698 = vmatprep.subr.bf16.mxu0 %v499
  %699 = vmatpush1.bf16.msra.mxu0 %v498
  %700 = vmatprep.subr.bf16.mxu0 %v501
  %701 = vmatpush1.bf16.msra.mxu0 %v500
  %702 = vmatprep.subr.bf16.mxu0 %v503
  %703 = vmatpush1.bf16.msra.mxu0 %v502
  %704 = vmatprep.subr.bf16.mxu0 %v505
  %705 = vmatpush1.bf16.msra.mxu0 %v504
  %706 = vmatprep.subr.bf16.mxu0 %v507
  %707 = vmatpush1.bf16.msra.mxu0 %v506
  %708 = vmatprep.subr.bf16.mxu0 %v509
  %709 = vmatpush1.bf16.msra.mxu0 %v508
  %710 = vmatprep.subr.bf16.mxu0 %v511
  %711 = vmatpush1.bf16.msra.mxu0 %v510
  %712 = vmatprep.subr.bf16.mxu0 %v513
  %713 = vmatpush1.bf16.msra.mxu0 %v512
  %714 = vmatprep.mubr.bf16.mxu0 %v72
  %715 = vmatmul.mubr.bf16.gmra.mrb[0].mxu0 %v71
  %v716 = vpop.f32.mrb[0].mxu0
  %v717 = vadd.f32 %v181, %v716
  %v718 = vpop.f32.mrb[0].mxu0
  %v719 = vadd.f32 %v185, %v718
  %v720 = vpop.f32.mrb[0].mxu0
  %v721 = vpop.f32.mrb[0].mxu0
  %722 = vdwg.mxu0
  %723 = vmatprep.subr.bf16.mxu0 %v515
  %724 = vmatpush1.bf16.msra.mxu0 %v514
  %725 = vmatprep.subr.bf16.mxu0 %v517
  %726 = vmatpush1.bf16.msra.mxu0 %v516
  %727 = vmatprep.subr.bf16.mxu0 %v519
  %728 = vmatpush1.bf16.msra.mxu0 %v518
  %729 = vmatprep.subr.bf16.mxu0 %v521
  %730 = vmatpush1.bf16.msra.mxu0 %v520
  %731 = vmatprep.subr.bf16.mxu0 %v523
  %732 = vmatpush1.bf16.msra.mxu0 %v522
  %733 = vmatprep.subr.bf16.mxu0 %v525
  %734 = vmatpush1.bf16.msra.mxu0 %v524
  %735 = vmatprep.subr.bf16.mxu0 %v527
  %736 = vmatpush1.bf16.msra.mxu0 %v526
  %737 = vmatprep.subr.bf16.mxu0 %v529
  %738 = vmatpush1.bf16.msra.mxu0 %v528
  %739 = vmatprep.subr.bf16.mxu0 %v531
  %740 = vmatpush1.bf16.msra.mxu0 %v530
  %741 = vmatprep.subr.bf16.mxu0 %v533
  %742 = vmatpush1.bf16.msra.mxu0 %v532
  %743 = vmatprep.subr.bf16.mxu0 %v535
  %744 = vmatpush1.bf16.msra.mxu0 %v534
  %745 = vmatprep.subr.bf16.mxu0 %v537
  %746 = vmatpush1.bf16.msra.mxu0 %v536
  %747 = vmatprep.subr.bf16.mxu0 %v539
  %748 = vmatpush1.bf16.msra.mxu0 %v538
  %749 = vmatprep.subr.bf16.mxu0 %v541
  %750 = vmatpush1.bf16.msra.mxu0 %v540
  %751 = vmatprep.subr.bf16.mxu0 %v543
  %752 = vmatpush1.bf16.msra.mxu0 %v542
  %753 = vmatprep.subr.bf16.mxu0 %v545
  %754 = vmatpush1.bf16.msra.mxu0 %v544
  %755 = vmatprep.mubr.bf16.mxu0 %v74
  %756 = vmatmul.mubr.bf16.gmra.mrb[0].mxu0 %v73
  %v757 = vpop.f32.mrb[0].mxu0
  %v758 = vadd.f32 %v717, %v757
  %v759 = vpop.f32.mrb[0].mxu0
  %v760 = vadd.f32 %v719, %v759
  %v761 = vpop.f32.mrb[0].mxu0
  %v762 = vpop.f32.mrb[0].mxu0
  %763 = vdwg.mxu0
  %764 = vmatprep.subr.bf16.mxu0 %v547
  %765 = vmatpush1.bf16.msra.mxu0 %v546
  %766 = vmatprep.subr.bf16.mxu0 %v549
  %767 = vmatpush1.bf16.msra.mxu0 %v548
  %768 = vmatprep.subr.bf16.mxu0 %v551
  %769 = vmatpush1.bf16.msra.mxu0 %v550
  %770 = vmatprep.subr.bf16.mxu0 %v553
  %771 = vmatpush1.bf16.msra.mxu0 %v552
  %772 = vmatprep.subr.bf16.mxu0 %v555
  %773 = vmatpush1.bf16.msra.mxu0 %v554
  %774 = vmatprep.subr.bf16.mxu0 %v557
  %775 = vmatpush1.bf16.msra.mxu0 %v556
  %776 = vmatprep.subr.bf16.mxu0 %v559
  %777 = vmatpush1.bf16.msra.mxu0 %v558
  %778 = vmatprep.subr.bf16.mxu0 %v561
  %779 = vmatpush1.bf16.msra.mxu0 %v560
  %780 = vmatprep.subr.bf16.mxu0 %v563
  %781 = vmatpush1.bf16.msra.mxu0 %v562
  %782 = vmatprep.subr.bf16.mxu0 %v565
  %783 = vmatpush1.bf16.msra.mxu0 %v564
  %784 = vmatprep.subr.bf16.mxu0 %v567
  %785 = vmatpush1.bf16.msra.mxu0 %v566
  %786 = vmatprep.subr.bf16.mxu0 %v569
  %787 = vmatpush1.bf16.msra.mxu0 %v568
  %788 = vmatprep.subr.bf16.mxu0 %v571
  %789 = vmatpush1.bf16.msra.mxu0 %v570
  %790 = vmatprep.subr.bf16.mxu0 %v573
  %791 = vmatpush1.bf16.msra.mxu0 %v572
  %792 = vmatprep.subr.bf16.mxu0 %v575
  %793 = vmatpush1.bf16.msra.mxu0 %v574
  %794 = vmatprep.subr.bf16.mxu0 %v577
  %795 = vmatpush1.bf16.msra.mxu0 %v576
  %796 = vmatprep.mubr.bf16.mxu0 %v76
  %797 = vmatmul.mubr.bf16.gmra.mrb[0].mxu0 %v75
  %v798 = vpop.f32.mrb[0].mxu0
  %v799 = vadd.f32 %v758, %v798
  %v800 = vpop.f32.mrb[0].mxu0
  %v801 = vadd.f32 %v760, %v800
  %v802 = vpop.f32.mrb[0].mxu0
  %v803 = vpop.f32.mrb[0].mxu0
  %804 = vdwg.mxu0
  %805 = vmatprep.subr.bf16.mxu0 %v579
  %806 = vmatpush1.bf16.msra.mxu0 %v578
  %807 = vmatprep.subr.bf16.mxu0 0
  %808 = vmatpush1.bf16.msra.mxu0 0
  %809 = vmatprep.subr.bf16.mxu0 0
  %810 = vmatpush1.bf16.msra.mxu0 0
  %811 = vmatprep.subr.bf16.mxu0 0
  %812 = vmatpush1.bf16.msra.mxu0 0
  %813 = vmatprep.subr.bf16.mxu0 0
  %814 = vmatpush1.bf16.msra.mxu0 0
  %815 = vmatprep.subr.bf16.mxu0 0
  %816 = vmatpush1.bf16.msra.mxu0 0
  %817 = vmatprep.subr.bf16.mxu0 0
  %818 = vmatpush1.bf16.msra.mxu0 0
  %819 = vmatprep.subr.bf16.mxu0 0
  %820 = vmatpush1.bf16.msra.mxu0 0
  %821 = vmatprep.subr.bf16.mxu0 0
  %822 = vmatpush1.bf16.msra.mxu0 0
  %823 = vmatprep.subr.bf16.mxu0 0
  %824 = vmatpush1.bf16.msra.mxu0 0
  %825 = vmatprep.subr.bf16.mxu0 0
  %826 = vmatpush1.bf16.msra.mxu0 0
  %827 = vmatprep.subr.bf16.mxu0 0
  %828 = vmatpush1.bf16.msra.mxu0 0
  %829 = vmatprep.subr.bf16.mxu0 0
  %830 = vmatpush1.bf16.msra.mxu0 0
  %831 = vmatprep.subr.bf16.mxu0 0
  %832 = vmatpush1.bf16.msra.mxu0 0
  %833 = vmatprep.subr.bf16.mxu0 0
  %834 = vmatpush1.bf16.msra.mxu0 0
  %835 = vmatprep.subr.bf16.mxu0 0
  %836 = vmatpush1.bf16.msra.mxu0 0
  %837 = vmatprep.mubr.bf16.mxu0 0
  %838 = vmatmul.mubr.bf16.gmra.mrb[0].mxu0 %v680
  %v839 = vpop.f32.mrb[0].mxu0
  %v840 = vadd.f32 %v799, %v839
  %v841 = vpop.f32.mrb[0].mxu0
  %v842 = vadd.f32 %v801, %v841
  %v843 = vpop.f32.mrb[0].mxu0
  %v844 = vpop.f32.mrb[0].mxu0
  %845 = vdwg.mxu0
  %v846 = vmax.f32 %v840, 0.0
  %v847 = vmax.f32 %v842, 0.0
  %v848 = vpack.c.bf16 %v846, %v846
  %v849 = vpack.c.bf16 %v847, %v847
  %v850 = vld [vmem:[%s3] sm:$0xff]
  %v851 = vld [vmem:[%s3 + $0x24] sm:$0xff]
  %v852 = vld [vmem:[%s3 + $0x48] sm:$0xff]
  %v853 = vld [vmem:[%s3 + $0x6c] sm:$0xff]
  %v854 = vld [vmem:[%s3 + $0x90] sm:$0xff]
  %v855 = vld [vmem:[%s3 + $0xb4] sm:$0xff]
  %v856 = vld [vmem:[%s3 + $0xd8] sm:$0xff]
  %v857 = vld [vmem:[%s3 + $0xfc] sm:$0xff]
  %v858 = vld [vmem:[%s3 + $0x120] sm:$0xff]
  %v859 = vld [vmem:[%s3 + $0x144] sm:$0xff]
  %v860 = vld [vmem:[%s3 + $0x168] sm:$0xff]
  %v861 = vld [vmem:[%s3 + $0x18c] sm:$0xff]
  %v862 = vld [vmem:[%s3 + $0x1b0] sm:$0xff]
  %v863 = vld [vmem:[%s3 + $0x1d4] sm:$0xff]
  %v864 = vld [vmem:[%s3 + $0x1f8] sm:$0xff]
  %v865 = vld [vmem:[%s3 + $0x21c] sm:$0xff]
  %v866 = vld [vmem:[%s3 + $0x240] sm:$0xff]
  %v867 = vld [vmem:[%s3 + $0x264] sm:$0xff]
  %v868 = vld [vmem:[%s3 + $0x288] sm:$0xff]
  %v869 = vld [vmem:[%s3 + $0x2ac] sm:$0xff]
  %v870 = vld [vmem:[%s3 + $0x2d0] sm:$0xff]
  %v871 = vld [vmem:[%s3 + $0x2f4] sm:$0xff]
  %v872 = vld [vmem:[%s3 + $0x318] sm:$0xff]
  %v873 = vld [vmem:[%s3 + $0x33c] sm:$0xff]
  %v874 = vld [vmem:[%s3 + $0x360] sm:$0xff]
  %v875 = vld [vmem:[%s3 + $0x384] sm:$0xff]
  %v876 = vld [vmem:[%s3 + $0x3a8] sm:$0xff]
  %v877 = vld [vmem:[%s3 + $0x3cc] sm:$0xff]
  %v878 = vld [vmem:[%s3 + $0x3f0] sm:$0xff]
  %v879 = vld [vmem:[%s3 + $0x414] sm:$0xff]
  %v880 = vld [vmem:[%s3 + $0x438] sm:$0xff]
  %v881 = vld [vmem:[%s3 + $0x45c] sm:$0xff]
  %v914 = vunpack.c.l.b16 %v850
  %v915 = vunpack.c.h.b16 %v850
  %v916 = vunpack.c.l.b16 %v851
  %v917 = vunpack.c.h.b16 %v851
  %v918 = vunpack.c.l.b16 %v852
  %v919 = vunpack.c.h.b16 %v852
  %v920 = vunpack.c.l.b16 %v853
  %v921 = vunpack.c.h.b16 %v853
  %v922 = vunpack.c.l.b16 %v854
  %v923 = vunpack.c.h.b16 %v854
  %v924 = vunpack.c.l.b16 %v855
  %v925 = vunpack.c.h.b16 %v855
  %v926 = vunpack.c.l.b16 %v856
  %v927 = vunpack.c.h.b16 %v856
  %v928 = vunpack.c.l.b16 %v857
  %v929 = vunpack.c.h.b16 %v857
  %v930 = vunpack.c.l.b16 %v858
  %v931 = vunpack.c.h.b16 %v858
  %v932 = vunpack.c.l.b16 %v859
  %v933 = vunpack.c.h.b16 %v859
  %v934 = vunpack.c.l.b16 %v860
  %v935 = vunpack.c.h.b16 %v860
  %v936 = vunpack.c.l.b16 %v861
  %v937 = vunpack.c.h.b16 %v861
  %v938 = vunpack.c.l.b16 %v862
  %v939 = vunpack.c.h.b16 %v862
  %v940 = vunpack.c.l.b16 %v863
  %v941 = vunpack.c.h.b16 %v863
  %v942 = vunpack.c.l.b16 %v864
  %v943 = vunpack.c.h.b16 %v864
  %v944 = vunpack.c.l.b16 %v865
  %v945 = vunpack.c.h.b16 %v865
  %v946 = vunpack.c.l.b16 %v866
  %v947 = vunpack.c.h.b16 %v866
  %v948 = vunpack.c.l.b16 %v867
  %v949 = vunpack.c.h.b16 %v867
  %v950 = vunpack.c.l.b16 %v868
  %v951 = vunpack.c.h.b16 %v868
  %v952 = vunpack.c.l.b16 %v869
  %v953 = vunpack.c.h.b16 %v869
  %v954 = vunpack.c.l.b16 %v870
  %v955 = vunpack.c.h.b16 %v870
  %v956 = vunpack.c.l.b16 %v871
  %v957 = vunpack.c.h.b16 %v871
  %v958 = vunpack.c.l.b16 %v872
  %v959 = vunpack.c.h.b16 %v872
  %v960 = vunpack.c.l.b16 %v873
  %v961 = vunpack.c.h.b16 %v873
  %v962 = vunpack.c.l.b16 %v874
  %v963 = vunpack.c.h.b16 %v874
  %v964 = vunpack.c.l.b16 %v875
  %v965 = vunpack.c.h.b16 %v875
  %v966 = vunpack.c.l.b16 %v876
  %v967 = vunpack.c.h.b16 %v876
  %v968 = vunpack.c.l.b16 %v877
  %v969 = vunpack.c.h.b16 %v877
  %v970 = vunpack.c.l.b16 %v878
  %v971 = vunpack.c.h.b16 %v878
  %v972 = vunpack.c.l.b16 %v879
  %v973 = vunpack.c.h.b16 %v879
  %v974 = vunpack.c.l.b16 %v880
  %v975 = vunpack.c.h.b16 %v880
  %v976 = vunpack.c.l.b16 %v881
  %v977 = vunpack.c.h.b16 %v881
  %v978 = vpack.c.b16 %v916, %v914
  %v979 = vpack.c.b16 %v917, %v915
  %v980 = vpack.c.b16 %v920, %v918
  %v981 = vpack.c.b16 %v921, %v919
  %v982 = vpack.c.b16 %v924, %v922
  %v983 = vpack.c.b16 %v925, %v923
  %v984 = vpack.c.b16 %v928, %v926
  %v985 = vpack.c.b16 %v929, %v927
  %v986 = vpack.c.b16 %v932, %v930
  %v987 = vpack.c.b16 %v933, %v931
  %v988 = vpack.c.b16 %v936, %v934
  %v989 = vpack.c.b16 %v937, %v935
  %v990 = vpack.c.b16 %v940, %v938
  %v991 = vpack.c.b16 %v941, %v939
  %v992 = vpack.c.b16 %v944, %v942
  %v993 = vpack.c.b16 %v945, %v943
  %v994 = vpack.c.b16 %v948, %v946
  %v995 = vpack.c.b16 %v949, %v947
  %v996 = vpack.c.b16 %v952, %v950
  %v997 = vpack.c.b16 %v953, %v951
  %v998 = vpack.c.b16 %v956, %v954
  %v999 = vpack.c.b16 %v957, %v955
  %v1000 = vpack.c.b16 %v960, %v958
  %v1001 = vpack.c.b16 %v961, %v959
  %v1002 = vpack.c.b16 %v964, %v962
  %v1003 = vpack.c.b16 %v965, %v963
  %v1004 = vpack.c.b16 %v968, %v966
  %v1005 = vpack.c.b16 %v969, %v967
  %v1006 = vpack.c.b16 %v972, %v970
  %v1007 = vpack.c.b16 %v973, %v971
  %v1008 = vpack.c.b16 %v976, %v974
  %v1009 = vpack.c.b16 %v977, %v975
  %1042 = vmatprep.subr.bf16.mxu0 %v979
  %1043 = vmatpush1.bf16.msra.mxu0 %v978
  %1044 = vmatprep.subr.bf16.mxu0 %v981
  %1045 = vmatpush1.bf16.msra.mxu0 %v980
  %1046 = vmatprep.subr.bf16.mxu0 %v983
  %1047 = vmatpush1.bf16.msra.mxu0 %v982
  %1048 = vmatprep.subr.bf16.mxu0 %v985
  %1049 = vmatpush1.bf16.msra.mxu0 %v984
  %1050 = vmatprep.subr.bf16.mxu0 %v987
  %1051 = vmatpush1.bf16.msra.mxu0 %v986
  %1052 = vmatprep.subr.bf16.mxu0 %v989
  %1053 = vmatpush1.bf16.msra.mxu0 %v988
  %1054 = vmatprep.subr.bf16.mxu0 %v991
  %1055 = vmatpush1.bf16.msra.mxu0 %v990
  %1056 = vmatprep.subr.bf16.mxu0 %v993
  %1057 = vmatpush1.bf16.msra.mxu0 %v992
  %1058 = vmatprep.subr.bf16.mxu0 %v995
  %1059 = vmatpush1.bf16.msra.mxu0 %v994
  %1060 = vmatprep.subr.bf16.mxu0 %v997
  %1061 = vmatpush1.bf16.msra.mxu0 %v996
  %1062 = vmatprep.subr.bf16.mxu0 %v999
  %1063 = vmatpush1.bf16.msra.mxu0 %v998
  %1064 = vmatprep.subr.bf16.mxu0 %v1001
  %1065 = vmatpush1.bf16.msra.mxu0 %v1000
  %1066 = vmatprep.subr.bf16.mxu0 %v1003
  %1067 = vmatpush1.bf16.msra.mxu0 %v1002
  %1068 = vmatprep.subr.bf16.mxu0 %v1005
  %1069 = vmatpush1.bf16.msra.mxu0 %v1004
  %1070 = vmatprep.subr.bf16.mxu0 %v1007
  %1071 = vmatpush1.bf16.msra.mxu0 %v1006
  %1072 = vmatprep.subr.bf16.mxu0 %v1009
  %1073 = vmatpush1.bf16.msra.mxu0 %v1008
  %1074 = vmatprep.mubr.bf16.mxu0 %v849
  %1075 = vmatmul.mubr.bf16.gmra.mrb[0].mxu0 %v848
  %v1076 = vpop.f32.mrb[0].mxu0
  %v1077 = vadd.f32 0.0, %v1076
  %v1078 = vpop.f32.mrb[0].mxu0
  %v1079 = vadd.f32 0.0, %v1078
  %v1080 = vpop.f32.mrb[0].mxu0
  %v1081 = vpop.f32.mrb[0].mxu0
  %1082 = vdwg.mxu0
  %v1083 = vld [vmem:[%s6 + $0x2] sm:$0x1]
  %v1085 = vlaneseq
  %v1086 = vshrl.u32 %v1085, 7
  %v1087 = vsub.s32 0, %v1086
  %v1088 = vrot.slane %v1083, %v1087
  %v1090 = vadd.f32 %v1077, %v1088
  %v1091 = vmax.f32 %v1090, 0.0
  %v1092 = vld [vmem:[%s6 + $0x6] sm:$0x1]
  %v1094 = vlaneseq
  %v1095 = vshrl.u32 %v1094, 7
  %v1096 = vsub.s32 0, %v1095
  %v1097 = vrot.slane %v1092, %v1096
  %v1099 = vadd.f32 %v1079, %v1097
  %v1100 = vpack.c.bf16 %v1091, %v1091
  %v1101 = vld [vmem:[%s4] sm:$0xf]
  %v1102 = vld [vmem:[%s4 + $0x10] sm:$0xf]
  %v1103 = vld [vmem:[%s4 + $0x20] sm:$0xf]
  %v1104 = vld [vmem:[%s4 + $0x30] sm:$0xf]
  %v1105 = vld [vmem:[%s4 + $0x40] sm:$0xf]
  %v1106 = vld [vmem:[%s4 + $0x50] sm:$0xf]
  %v1107 = vld [vmem:[%s4 + $0x60] sm:$0xf]
  %v1108 = vld [vmem:[%s4 + $0x70] sm:$0xf]
  %v1109 = vld [vmem:[%s4 + $0x80] sm:$0xf]
  %v1110 = vld [vmem:[%s4 + $0x90] sm:$0xf]
  %v1111 = vld [vmem:[%s4 + $0xa0] sm:$0xf]
  %v1112 = vld [vmem:[%s4 + $0xb0] sm:$0xf]
  %v1113 = vld [vmem:[%s4 + $0xc0] sm:$0xf]
  %v1114 = vld [vmem:[%s4 + $0xd0] sm:$0xf]
  %v1115 = vld [vmem:[%s4 + $0xe0] sm:$0xf]
  %v1116 = vld [vmem:[%s4 + $0xf0] sm:$0xf]
  %v1117 = vld [vmem:[%s6 + $0x3] sm:$0x1]
  %v1119 = vlaneseq
  %v1120 = vshrl.u32 %v1119, 7
  %v1121 = vsub.s32 0, %v1120
  %v1122 = vrot.slane %v1117, %v1121
  %v1140 = vunpack.c.l.b16 %v1101
  %v1141 = vunpack.c.l.b16 %v1102
  %v1142 = vunpack.c.l.b16 %v1103
  %v1143 = vunpack.c.l.b16 %v1104
  %v1144 = vunpack.c.l.b16 %v1105
  %v1145 = vunpack.c.l.b16 %v1106
  %v1146 = vunpack.c.l.b16 %v1107
  %v1147 = vunpack.c.l.b16 %v1108
  %v1148 = vunpack.c.l.b16 %v1109
  %v1149 = vunpack.c.l.b16 %v1110
  %v1150 = vunpack.c.l.b16 %v1111
  %v1151 = vunpack.c.l.b16 %v1112
  %v1152 = vunpack.c.l.b16 %v1113
  %v1153 = vunpack.c.l.b16 %v1114
  %v1154 = vunpack.c.l.b16 %v1115
  %v1155 = vunpack.c.l.b16 %v1116
  %v1156 = vpack.c.b16 %v1141, %v1140
  %v1157 = vpack.c.b16 %v1143, %v1142
  %v1158 = vpack.c.b16 %v1145, %v1144
  %v1159 = vpack.c.b16 %v1147, %v1146
  %v1160 = vpack.c.b16 %v1149, %v1148
  %v1161 = vpack.c.b16 %v1151, %v1150
  %v1162 = vpack.c.b16 %v1153, %v1152
  %v1163 = vpack.c.b16 %v1155, %v1154
  %1172 = vmatprep.subr.bf16.mxu0 0
  %1173 = vmatpush1.bf16.msra.mxu0 %v1156
  %1174 = vmatprep.subr.bf16.mxu0 0
  %1175 = vmatpush1.bf16.msra.mxu0 %v1157
  %1176 = vmatprep.subr.bf16.mxu0 0
  %1177 = vmatpush1.bf16.msra.mxu0 %v1158
  %1178 = vmatprep.subr.bf16.mxu0 0
  %1179 = vmatpush1.bf16.msra.mxu0 %v1159
  %1180 = vmatprep.subr.bf16.mxu0 0
  %1181 = vmatpush1.bf16.msra.mxu0 %v1160
  %1182 = vmatprep.subr.bf16.mxu0 0
  %1183 = vmatpush1.bf16.msra.mxu0 %v1161
  %1184 = vmatprep.subr.bf16.mxu0 0
  %1185 = vmatpush1.bf16.msra.mxu0 %v1162
  %1186 = vmatprep.subr.bf16.mxu0 0
  %1187 = vmatpush1.bf16.msra.mxu0 %v1163
  %1188 = vmatprep.subr.bf16.mxu0 0
  %1189 = vmatpush1.bf16.msra.mxu0 0
  %1190 = vmatprep.subr.bf16.mxu0 0
  %1191 = vmatpush1.bf16.msra.mxu0 0
  %1192 = vmatprep.subr.bf16.mxu0 0
  %1193 = vmatpush1.bf16.msra.mxu0 0
  %1194 = vmatprep.subr.bf16.mxu0 0
  %1195 = vmatpush1.bf16.msra.mxu0 0
  %1196 = vmatprep.subr.bf16.mxu0 0
  %1197 = vmatpush1.bf16.msra.mxu0 0
  %1198 = vmatprep.subr.bf16.mxu0 0
  %1199 = vmatpush1.bf16.msra.mxu0 0
  %1200 = vmatprep.subr.bf16.mxu0 0
  %1201 = vmatpush1.bf16.msra.mxu0 0
  %1202 = vmatprep.subr.bf16.mxu0 0
  %1203 = vmatpush1.bf16.msra.mxu0 0
  %1204 = vmatprep.mubr.bf16.mxu0 0
  %1205 = vmatmul.mubr.bf16.gmra.mrb[0].mxu0 %v1100
  %v1206 = vpop.f32.mrb[0].mxu0
  %v1207 = vadd.f32 %v1122, %v1206
  %v1208 = vpop.f32.mrb[0].mxu0
  %v1209 = vpop.f32.mrb[0].mxu0
  %v1210 = vpop.f32.mrb[0].mxu0
  %1211 = vdwg.mxu0
  %v1212 = vmul.f32 %v1207, 0.5
  %v1213 = vmul.f32 %v1212, 1.442695
  %v1214 = vpow.pop %v1213
  %v1215 = vld [vmem:[%s1] sm:$0x3]
  %v1216 = vmul.f32 %v1214, %v1215
  %1218 = vrot.lane.b32.xlu0 %v1216, 120
  %v1219 = vpop.permute.xlu0 %1218
  %v1221 = vadd.f32 %v1207, %v1219
  %v1222 = vpack.c.bf16 %v1221, %v1221
  %v1223 = vld [vmem:[%s5] sm:$0xf]
  %v1224 = vld [vmem:[%s6 + $0x4] sm:$0x1]
  %v1226 = vlaneseq
  %v1227 = vshrl.u32 %v1226, 7
  %v1228 = vsub.s32 0, %v1227
  %v1229 = vrot.slane %v1224, %v1228
  %vm1231 = vcmask 64512
  %v1233 = vsel %vm1231, %v1222, 0
  %vm1235 = vcmask 1043456
  %v1237 = vsel %vm1235, %v1223, 0
  %1239 = vmatprep.subr.bf16.mxu0 0
  %1240 = vmatpush1.bf16.msra.mxu0 %v1237
  %1241 = vmatprep.subr.bf16.mxu0 0
  %1242 = vmatpush1.bf16.msra.mxu0 0
  %1243 = vmatprep.subr.bf16.mxu0 0
  %1244 = vmatpush1.bf16.msra.mxu0 0
  %1245 = vmatprep.subr.bf16.mxu0 0
  %1246 = vmatpush1.bf16.msra.mxu0 0
  %1247 = vmatprep.subr.bf16.mxu0 0
  %1248 = vmatpush1.bf16.msra.mxu0 0
  %1249 = vmatprep.subr.bf16.mxu0 0
  %1250 = vmatpush1.bf16.msra.mxu0 0
  %1251 = vmatprep.subr.bf16.mxu0 0
  %1252 = vmatpush1.bf16.msra.mxu0 0
  %1253 = vmatprep.subr.bf16.mxu0 0
  %1254 = vmatpush1.bf16.msra.mxu0 0
  %1255 = vmatprep.subr.bf16.mxu0 0
  %1256 = vmatpush1.bf16.msra.mxu0 0
  %1257 = vmatprep.subr.bf16.mxu0 0
  %1258 = vmatpush1.bf16.msra.mxu0 0
  %1259 = vmatprep.subr.bf16.mxu0 0
  %1260 = vmatpush1.bf16.msra.mxu0 0
  %1261 = vmatprep.subr.bf16.mxu0 0
  %1262 = vmatpush1.bf16.msra.mxu0 0
  %1263 = vmatprep.subr.bf16.mxu0 0
  %1264 = vmatpush1.bf16.msra.mxu0 0
  %1265 = vmatprep.subr.bf16.mxu0 0
  %1266 = vmatpush1.bf16.msra.mxu0 0
  %1267 = vmatprep.subr.bf16.mxu0 0
  %1268 = vmatpush1.bf16.msra.mxu0 0
  %1269 = vmatprep.subr.bf16.mxu0 0
  %1270 = vmatpush1.bf16.msra.mxu0 0
  %1271 = vmatprep.mubr.bf16.mxu0 0
  %1272 = vmatmul.mubr.bf16.gmra.mrb[0].mxu0 %v1233
  %v1273 = vpop.f32.mrb[0].mxu0
  %v1274 = vadd.f32 %v1229, %v1273
  %v1275 = vpop.f32.mrb[0].mxu0
  %v1276 = vpop.f32.mrb[0].mxu0
  %v1277 = vpop.f32.mrb[0].mxu0
  %1278 = vdwg.mxu0
  %v1279 = vmax.f32 %v1274, 0.0
  %v1280 = vpack.c.bf16 %v1279, %v1279
  %v1281 = vld [vmem:[%s4 + $0x4] sm:$0xf]
  %v1282 = vld [vmem:[%s4 + $0x14] sm:$0xf]
  %v1283 = vld [vmem:[%s4 + $0x24] sm:$0xf]
  %v1284 = vld [vmem:[%s4 + $0x34] sm:$0xf]
  %v1285 = vld [vmem:[%s4 + $0x44] sm:$0xf]
  %v1286 = vld [vmem:[%s4 + $0x54] sm:$0xf]
  %v1287 = vld [vmem:[%s4 + $0x64] sm:$0xf]
  %v1288 = vld [vmem:[%s4 + $0x74] sm:$0xf]
  %v1289 = vld [vmem:[%s4 + $0x84] sm:$0xf]
  %v1290 = vld [vmem:[%s4 + $0x94] sm:$0xf]
  %v1291 = vld [vmem:[%s4 + $0xa4] sm:$0xf]
  %v1292 = vld [vmem:[%s4 + $0xb4] sm:$0xf]
  %v1293 = vld [vmem:[%s4 + $0xc4] sm:$0xf]
  %v1294 = vld [vmem:[%s4 + $0xd4] sm:$0xf]
  %v1295 = vld [vmem:[%s4 + $0xe4] sm:$0xf]
  %v1296 = vld [vmem:[%s4 + $0xf4] sm:$0xf]
  %v1297 = vld [vmem:[%s6 + $0x5] sm:$0x1]
  %v1299 = vlaneseq
  %v1300 = vshrl.u32 %v1299, 7
  %v1301 = vsub.s32 0, %v1300
  %v1302 = vrot.slane %v1297, %v1301
  %v1320 = vunpack.c.l.b16 %v1281
  %v1321 = vunpack.c.l.b16 %v1282
  %v1322 = vunpack.c.l.b16 %v1283
  %v1323 = vunpack.c.l.b16 %v1284
  %v1324 = vunpack.c.l.b16 %v1285
  %v1325 = vunpack.c.l.b16 %v1286
  %v1326 = vunpack.c.l.b16 %v1287
  %v1327 = vunpack.c.l.b16 %v1288
  %v1328 = vunpack.c.l.b16 %v1289
  %v1329 = vunpack.c.l.b16 %v1290
  %v1330 = vunpack.c.l.b16 %v1291
  %v1331 = vunpack.c.l.b16 %v1292
  %v1332 = vunpack.c.l.b16 %v1293
  %v1333 = vunpack.c.l.b16 %v1294
  %v1334 = vunpack.c.l.b16 %v1295
  %v1335 = vunpack.c.l.b16 %v1296
  %v1336 = vpack.c.b16 %v1321, %v1320
  %v1337 = vpack.c.b16 %v1323, %v1322
  %v1338 = vpack.c.b16 %v1325, %v1324
  %v1339 = vpack.c.b16 %v1327, %v1326
  %v1340 = vpack.c.b16 %v1329, %v1328
  %v1341 = vpack.c.b16 %v1331, %v1330
  %v1342 = vpack.c.b16 %v1333, %v1332
  %v1343 = vpack.c.b16 %v1335, %v1334
  %1352 = vmatprep.subr.bf16.mxu0 0
  %1353 = vmatpush1.bf16.msra.mxu0 %v1336
  %1354 = vmatprep.subr.bf16.mxu0 0
  %1355 = vmatpush1.bf16.msra.mxu0 %v1337
  %1356 = vmatprep.subr.bf16.mxu0 0
  %1357 = vmatpush1.bf16.msra.mxu0 %v1338
  %1358 = vmatprep.subr.bf16.mxu0 0
  %1359 = vmatpush1.bf16.msra.mxu0 %v1339
  %1360 = vmatprep.subr.bf16.mxu0 0
  %1361 = vmatpush1.bf16.msra.mxu0 %v1340
  %1362 = vmatprep.subr.bf16.mxu0 0
  %1363 = vmatpush1.bf16.msra.mxu0 %v1341
  %1364 = vmatprep.subr.bf16.mxu0 0
  %1365 = vmatpush1.bf16.msra.mxu0 %v1342
  %1366 = vmatprep.subr.bf16.mxu0 0
  %1367 = vmatpush1.bf16.msra.mxu0 %v1343
  %1368 = vmatprep.subr.bf16.mxu0 0
  %1369 = vmatpush1.bf16.msra.mxu0 0
  %1370 = vmatprep.subr.bf16.mxu0 0
  %1371 = vmatpush1.bf16.msra.mxu0 0
  %1372 = vmatprep.subr.bf16.mxu0 0
  %1373 = vmatpush1.bf16.msra.mxu0 0
  %1374 = vmatprep.subr.bf16.mxu0 0
  %1375 = vmatpush1.bf16.msra.mxu0 0
  %1376 = vmatprep.subr.bf16.mxu0 0
  %1377 = vmatpush1.bf16.msra.mxu0 0
  %1378 = vmatprep.subr.bf16.mxu0 0
  %1379 = vmatpush1.bf16.msra.mxu0 0
  %1380 = vmatprep.subr.bf16.mxu0 0
  %1381 = vmatpush1.bf16.msra.mxu0 0
  %1382 = vmatprep.subr.bf16.mxu0 0
  %1383 = vmatpush1.bf16.msra.mxu0 0
  %1384 = vmatprep.mubr.bf16.mxu0 0
  %1385 = vmatmul.mubr.bf16.gmra.mrb[0].mxu0 %v1280
  %v1386 = vpop.f32.mrb[0].mxu0
  %v1387 = vadd.f32 %v1302, %v1386
  %v1388 = vpop.f32.mrb[0].mxu0
  %v1389 = vpop.f32.mrb[0].mxu0
  %v1390 = vpop.f32.mrb[0].mxu0
  %1391 = vdwg.mxu0
  %v1392 = vsub.f32 0.0, %v1387
  %v1393 = vmul.f32 %v1392, 1.442695
  %v1394 = vpow.pop %v1393
  %v1395 = vsub.f32 0.0, %v1099
  %v1396 = vmul.f32 %v1395, 1.442695
  %v1397 = vpow.pop %v1396
  %v1398 = vadd.f32 %v1394, %v1397
  %v1399 = vrcp.pop %v1398
  %v1400 = vrsqrt.pop %v1398
  %1402 = vrot.lane.b32.xlu0 %v1394, 120
  %v1403 = vpop.permute.xlu0 %1402
  %v1405 = vmul.f32 %v1387, %v1403
  %1407 = vrot.lane.b32.xlu0 %v1397, 120
  %v1408 = vpop.permute.xlu0 %1407
  %v1410 = vmul.f32 %v1099, %v1408
  %v1411 = vadd.f32 %v1405, %v1410
  %1413 = vrot.lane.b32.xlu0 %v1399, 120
  %v1414 = vpop.permute.xlu0 %1413
  %v1416 = vmul.f32 %v1411, %v1414
  %1418 = vrot.lane.b32.xlu0 %v1215, 8
  %v1419 = vpop.permute.xlu0 %1418
  %v1421 = vmul.f32 %v1400, %v1419
  %1423 = vrot.lane.b32.xlu0 %v1421, 120
  %v1424 = vpop.permute.xlu0 %1423
  %v1426 = vadd.f32 %v1416, %v1424
  %v1427 = vpack.c.bf16 %v1426, %v1426
  %v1428 = vld [vmem:[%s5 + $0x4] sm:$0xf]
  %v1429 = vld [vmem:[%s6 + $0x7] sm:$0x1]
  %v1431 = vlaneseq
  %v1432 = vshrl.u32 %v1431, 7
  %v1433 = vsub.s32 0, %v1432
  %v1434 = vrot.slane %v1429, %v1433
  %v1437 = vsel %vm1231, %v1427, 0
  %v1440 = vsel %vm1235, %v1428, 0
  %1442 = vmatprep.subr.bf16.mxu0 0
  %1443 = vmatpush1.bf16.msra.mxu0 %v1440
  %1444 = vmatprep.subr.bf16.mxu0 0
  %1445 = vmatpush1.bf16.msra.mxu0 0
  %1446 = vmatprep.subr.bf16.mxu0 0
  %1447 = vmatpush1.bf16.msra.mxu0 0
  %1448 = vmatprep.subr.bf16.mxu0 0
  %1449 = vmatpush1.bf16.msra.mxu0 0
  %1450 = vmatprep.subr.bf16.mxu0 0
  %1451 = vmatpush1.bf16.msra.mxu0 0
  %1452 = vmatprep.subr.bf16.mxu0 0
  %1453 = vmatpush1.bf16.msra.mxu0 0
  %1454 = vmatprep.subr.bf16.mxu0 0
  %1455 = vmatpush1.bf16.msra.mxu0 0
  %1456 = vmatprep.subr.bf16.mxu0 0
  %1457 = vmatpush1.bf16.msra.mxu0 0
  %1458 = vmatprep.subr.bf16.mxu0 0
  %1459 = vmatpush1.bf16.msra.mxu0 0
  %1460 = vmatprep.subr.bf16.mxu0 0
  %1461 = vmatpush1.bf16.msra.mxu0 0
  %1462 = vmatprep.subr.bf16.mxu0 0
  %1463 = vmatpush1.bf16.msra.mxu0 0
  %1464 = vmatprep.subr.bf16.mxu0 0
  %1465 = vmatpush1.bf16.msra.mxu0 0
  %1466 = vmatprep.subr.bf16.mxu0 0
  %1467 = vmatpush1.bf16.msra.mxu0 0
  %1468 = vmatprep.subr.bf16.mxu0 0
  %1469 = vmatpush1.bf16.msra.mxu0 0
  %1470 = vmatprep.subr.bf16.mxu0 0
  %1471 = vmatpush1.bf16.msra.mxu0 0
  %1472 = vmatprep.subr.bf16.mxu0 0
  %1473 = vmatpush1.bf16.msra.mxu0 0
  %1474 = vmatprep.mubr.bf16.mxu0 0
  %1475 = vmatmul.mubr.bf16.gmra.mrb[0].mxu0 %v1437
  %v1476 = vpop.f32.mrb[0].mxu0
  %v1477 = vadd.f32 %v1434, %v1476
  %v1478 = vpop.f32.mrb[0].mxu0
  %v1479 = vpop.f32.mrb[0].mxu0
  %v1480 = vpop.f32.mrb[0].mxu0
  %1481 = vdwg.mxu0
  %v1482 = vadd.f32 %v1477, %v1279
  %v1483 = vmax.f32 %v1482, 0.0
  %v1484 = vpack.c.bf16 %v1483, %v1483
  %v1485 = vld [vmem:[%s4 + $0x8] sm:$0xff]
  %v1486 = vld [vmem:[%s4 + $0x18] sm:$0xff]
  %v1487 = vld [vmem:[%s4 + $0x28] sm:$0xff]
  %v1488 = vld [vmem:[%s4 + $0x38] sm:$0xff]
  %v1489 = vld [vmem:[%s4 + $0x48] sm:$0xff]
  %v1490 = vld [vmem:[%s4 + $0x58] sm:$0xff]
  %v1491 = vld [vmem:[%s4 + $0x68] sm:$0xff]
  %v1492 = vld [vmem:[%s4 + $0x78] sm:$0xff]
  %v1493 = vld [vmem:[%s4 + $0x88] sm:$0xff]
  %v1494 = vld [vmem:[%s4 + $0x98] sm:$0xff]
  %v1495 = vld [vmem:[%s4 + $0xa8] sm:$0xff]
  %v1496 = vld [vmem:[%s4 + $0xb8] sm:$0xff]
  %v1497 = vld [vmem:[%s4 + $0xc8] sm:$0xff]
  %v1498 = vld [vmem:[%s4 + $0xd8] sm:$0xff]
  %v1499 = vld [vmem:[%s4 + $0xe8] sm:$0xff]
  %v1500 = vld [vmem:[%s4 + $0xf8] sm:$0xff]
  %v1501 = vld [vmem:[%s6 + $0x8] sm:$0x3]
  %v1503 = vlaneseq
  %v1504 = vshrl.u32 %v1503, 7
  %v1505 = vsub.s32 0, %v1504
  %v1506 = vrot.slane %v1501, %v1505
  %v1507 = vlaneseq
  %v1508 = vshrl.u32 %v1507, 7
  %v1509 = vsub.s32 1, %v1508
  %v1510 = vrot.slane %v1501, %v1509
  %v1529 = vunpack.c.l.b16 %v1485
  %v1530 = vunpack.c.h.b16 %v1485
  %v1531 = vunpack.c.l.b16 %v1486
  %v1532 = vunpack.c.h.b16 %v1486
  %v1533 = vunpack.c.l.b16 %v1487
  %v1534 = vunpack.c.h.b16 %v1487
  %v1535 = vunpack.c.l.b16 %v1488
  %v1536 = vunpack.c.h.b16 %v1488
  %v1537 = vunpack.c.l.b16 %v1489
  %v1538 = vunpack.c.h.b16 %v1489
  %v1539 = vunpack.c.l.b16 %v1490
  %v1540 = vunpack.c.h.b16 %v1490
  %v1541 = vunpack.c.l.b16 %v1491
  %v1542 = vunpack.c.h.b16 %v1491
  %v1543 = vunpack.c.l.b16 %v1492
  %v1544 = vunpack.c.h.b16 %v1492
  %v1545 = vunpack.c.l.b16 %v1493
  %v1546 = vunpack.c.h.b16 %v1493
  %v1547 = vunpack.c.l.b16 %v1494
  %v1548 = vunpack.c.h.b16 %v1494
  %v1549 = vunpack.c.l.b16 %v1495
  %v1550 = vunpack.c.h.b16 %v1495
  %v1551 = vunpack.c.l.b16 %v1496
  %v1552 = vunpack.c.h.b16 %v1496
  %v1553 = vunpack.c.l.b16 %v1497
  %v1554 = vunpack.c.h.b16 %v1497
  %v1555 = vunpack.c.l.b16 %v1498
  %v1556 = vunpack.c.h.b16 %v1498
  %v1557 = vunpack.c.l.b16 %v1499
  %v1558 = vunpack.c.h.b16 %v1499
  %v1559 = vunpack.c.l.b16 %v1500
  %v1560 = vunpack.c.h.b16 %v1500
  %v1561 = vpack.c.b16 %v1531, %v1529
  %v1562 = vpack.c.b16 %v1532, %v1530
  %v1563 = vpack.c.b16 %v1535, %v1533
  %v1564 = vpack.c.b16 %v1536, %v1534
  %v1565 = vpack.c.b16 %v1539, %v1537
  %v1566 = vpack.c.b16 %v1540, %v1538
  %v1567 = vpack.c.b16 %v1543, %v1541
  %v1568 = vpack.c.b16 %v1544, %v1542
  %v1569 = vpack.c.b16 %v1547, %v1545
  %v1570 = vpack.c.b16 %v1548, %v1546
  %v1571 = vpack.c.b16 %v1551, %v1549
  %v1572 = vpack.c.b16 %v1552, %v1550
  %v1573 = vpack.c.b16 %v1555, %v1553
  %v1574 = vpack.c.b16 %v1556, %v1554
  %v1575 = vpack.c.b16 %v1559, %v1557
  %v1576 = vpack.c.b16 %v1560, %v1558
  %1593 = vmatprep.subr.bf16.mxu0 %v1562
  %1594 = vmatpush1.bf16.msra.mxu0 %v1561
  %1595 = vmatprep.subr.bf16.mxu0 %v1564
  %1596 = vmatpush1.bf16.msra.mxu0 %v1563
  %1597 = vmatprep.subr.bf16.mxu0 %v1566
  %1598 = vmatpush1.bf16.msra.mxu0 %v1565
  %1599 = vmatprep.subr.bf16.mxu0 %v1568
  %1600 = vmatpush1.bf16.msra.mxu0 %v1567
  %1601 = vmatprep.subr.bf16.mxu0 %v1570
  %1602 = vmatpush1.bf16.msra.mxu0 %v1569
  %1603 = vmatprep.subr.bf16.mxu0 %v1572
  %1604 = vmatpush1.bf16.msra.mxu0 %v1571
  %1605 = vmatprep.subr.bf16.mxu0 %v1574
  %1606 = vmatpush1.bf16.msra.mxu0 %v1573
  %1607 = vmatprep.subr.bf16.mxu0 %v1576
  %1608 = vmatpush1.bf16.msra.mxu0 %v1575
  %1609 = vmatprep.subr.bf16.mxu0 0
  %1610 = vmatpush1.bf16.msra.mxu0 0
  %1611 = vmatprep.subr.bf16.mxu0 0
  %1612 = vmatpush1.bf16.msra.mxu0 0
  %1613 = vmatprep.subr.bf16.mxu0 0
  %1614 = vmatpush1.bf16.msra.mxu0 0
  %1615 = vmatprep.subr.bf16.mxu0 0
  %1616 = vmatpush1.bf16.msra.mxu0 0
  %1617 = vmatprep.subr.bf16.mxu0 0
  %1618 = vmatpush1.bf16.msra.mxu0 0
  %1619 = vmatprep.subr.bf16.mxu0 0
  %1620 = vmatpush1.bf16.msra.mxu0 0
  %1621 = vmatprep.subr.bf16.mxu0 0
  %1622 = vmatpush1.bf16.msra.mxu0 0
  %1623 = vmatprep.subr.bf16.mxu0 0
  %1624 = vmatpush1.bf16.msra.mxu0 0
  %1625 = vmatprep.mubr.bf16.mxu0 0
  %1626 = vmatmul.mubr.bf16.gmra.mrb[0].mxu0 %v1484
  %v1627 = vpop.f32.mrb[0].mxu0
  %v1628 = vadd.f32 %v1506, %v1627
  %v1629 = vpop.f32.mrb[0].mxu0
  %v1630 = vadd.f32 %v1510, %v1629
  %v1631 = vpop.f32.mrb[0].mxu0
  %v1632 = vpop.f32.mrb[0].mxu0
  %1633 = vdwg.mxu0
  %v1634 = vmax.f32 %v1628, 0.0
  %v1635 = vmax.f32 %v1630, 0.0
  %v1636 = vpack.c.bf16 %v1634, %v1634
  %v1637 = vpack.c.bf16 %v1635, %v1635
  %v1638 = vld [vmem:[%s3 + $0x8] sm:$0xff]
  %v1639 = vld [vmem:[%s3 + $0x10] sm:$0xff]
  %v1640 = vld [vmem:[%s3 + $0x18] sm:$0xff]
  %v1641 = vld [vmem:[%s3 + $0x20] sm:$0xf]
  %v1642 = vld [vmem:[%s3 + $0x2c] sm:$0xff]
  %v1643 = vld [vmem:[%s3 + $0x34] sm:$0xff]
  %v1644 = vld [vmem:[%s3 + $0x3c] sm:$0xff]
  %v1645 = vld [vmem:[%s3 + $0x44] sm:$0xf]
  %v1646 = vld [vmem:[%s3 + $0x50] sm:$0xff]
  %v1647 = vld [vmem:[%s3 + $0x58] sm:$0xff]
  %v1648 = vld [vmem:[%s3 + $0x60] sm:$0xff]
  %v1649 = vld [vmem:[%s3 + $0x68] sm:$0xf]
  %v1650 = vld [vmem:[%s3 + $0x74] sm:$0xff]
  %v1651 = vld [vmem:[%s3 + $0x7c] sm:$0xff]
  %v1652 = vld [vmem:[%s3 + $0x84] sm:$0xff]
  %v1653 = vld [vmem:[%s3 + $0x8c] sm:$0xf]
  %v1654 = vld [vmem:[%s3 + $0x98] sm:$0xff]
  %v1655 = vld [vmem:[%s3 + $0xa0] sm:$0xff]
  %v1656 = vld [vmem:[%s3 + $0xa8] sm:$0xff]
  %v1657 = vld [vmem:[%s3 + $0xb0] sm:$0xf]
  %v1658 = vld [vmem:[%s3 + $0xbc] sm:$0xff]
  %v1659 = vld [vmem:[%s3 + $0xc4] sm:$0xff]
  %v1660 = vld [vmem:[%s3 + $0xcc] sm:$0xff]
  %v1661 = vld [vmem:[%s3 + $0xd4] sm:$0xf]
  %v1662 = vld [vmem:[%s3 + $0xe0] sm:$0xff]
  %v1663 = vld [vmem:[%s3 + $0xe8] sm:$0xff]
  %v1664 = vld [vmem:[%s3 + $0xf0] sm:$0xff]
  %v1665 = vld [vmem:[%s3 + $0xf8] sm:$0xf]
  %v1666 = vld [vmem:[%s3 + $0x104] sm:$0xff]
  %v1667 = vld [vmem:[%s3 + $0x10c] sm:$0xff]
  %v1668 = vld [vmem:[%s3 + $0x114] sm:$0xff]
  %v1669 = vld [vmem:[%s3 + $0x11c] sm:$0xf]
  %v1670 = vld [vmem:[%s3 + $0x128] sm:$0xff]
  %v1671 = vld [vmem:[%s3 + $0x130] sm:$0xff]
  %v1672 = vld [vmem:[%s3 + $0x138] sm:$0xff]
  %v1673 = vld [vmem:[%s3 + $0x140] sm:$0xf]
  %v1674 = vld [vmem:[%s3 + $0x14c] sm:$0xff]
  %v1675 = vld [vmem:[%s3 + $0x154] sm:$0xff]
  %v1676 = vld [vmem:[%s3 + $0x15c] sm:$0xff]
  %v1677 = vld [vmem:[%s3 + $0x164] sm:$0xf]
  %v1678 = vld [vmem:[%s3 + $0x170] sm:$0xff]
  %v1679 = vld [vmem:[%s3 + $0x178] sm:$0xff]
  %v1680 = vld [vmem:[%s3 + $0x180] sm:$0xff]
  %v1681 = vld [vmem:[%s3 + $0x188] sm:$0xf]
  %v1682 = vld [vmem:[%s3 + $0x194] sm:$0xff]
  %v1683 = vld [vmem:[%s3 + $0x19c] sm:$0xff]
  %v1684 = vld [vmem:[%s3 + $0x1a4] sm:$0xff]
  %v1685 = vld [vmem:[%s3 + $0x1ac] sm:$0xf]
  %v1686 = vld [vmem:[%s3 + $0x1b8] sm:$0xff]
  %v1687 = vld [vmem:[%s3 + $0x1c0] sm:$0xff]
  %v1688 = vld [vmem:[%s3 + $0x1c8] sm:$0xff]
  %v1689 = vld [vmem:[%s3 + $0x1d0] sm:$0xf]
  %v1690 = vld [vmem:[%s3 + $0x1dc] sm:$0xff]
  %v1691 = vld [vmem:[%s3 + $0x1e4] sm:$0xff]
  %v1692 = vld [vmem:[%s3 + $0x1ec] sm:$0xff]
  %v1693 = vld [vmem:[%s3 + $0x1f4] sm:$0xf]
  %v1694 = vld [vmem:[%s3 + $0x200] sm:$0xff]
  %v1695 = vld [vmem:[%s3 + $0x208] sm:$0xff]
  %v1696 = vld [vmem:[%s3 + $0x210] sm:$0xff]
  %v1697 = vld [vmem:[%s3 + $0x218] sm:$0xf]
  %v1698 = vld [vmem:[%s3 + $0x224] sm:$0xff]
  %v1699 = vld [vmem:[%s3 + $0x22c] sm:$0xff]
  %v1700 = vld [vmem:[%s3 + $0x234] sm:$0xff]
  %v1701 = vld [vmem:[%s3 + $0x23c] sm:$0xf]
  %v1702 = vld [vmem:[%s3 + $0x248] sm:$0xff]
  %v1703 = vld [vmem:[%s3 + $0x250] sm:$0xff]
  %v1704 = vld [vmem:[%s3 + $0x258] sm:$0xff]
  %v1705 = vld [vmem:[%s3 + $0x260] sm:$0xf]
  %v1706 = vld [vmem:[%s3 + $0x26c] sm:$0xff]
  %v1707 = vld [vmem:[%s3 + $0x274] sm:$0xff]
  %v1708 = vld [vmem:[%s3 + $0x27c] sm:$0xff]
  %v1709 = vld [vmem:[%s3 + $0x284] sm:$0xf]
  %v1710 = vld [vmem:[%s3 + $0x290] sm:$0xff]
  %v1711 = vld [vmem:[%s3 + $0x298] sm:$0xff]
  %v1712 = vld [vmem:[%s3 + $0x2a0] sm:$0xff]
  %v1713 = vld [vmem:[%s3 + $0x2a8] sm:$0xf]
  %v1714 = vld [vmem:[%s3 + $0x2b4] sm:$0xff]
  %v1715 = vld [vmem:[%s3 + $0x2bc] sm:$0xff]
  %v1716 = vld [vmem:[%s3 + $0x2c4] sm:$0xff]
  %v1717 = vld [vmem:[%s3 + $0x2cc] sm:$0xf]
  %v1718 = vld [vmem:[%s3 + $0x2d8] sm:$0xff]
  %v1719 = vld [vmem:[%s3 + $0x2e0] sm:$0xff]
  %v1720 = vld [vmem:[%s3 + $0x2e8] sm:$0xff]
  %v1721 = vld [vmem:[%s3 + $0x2f0] sm:$0xf]
  %v1722 = vld [vmem:[%s3 + $0x2fc] sm:$0xff]
  %v1723 = vld [vmem:[%s3 + $0x304] sm:$0xff]
  %v1724 = vld [vmem:[%s3 + $0x30c] sm:$0xff]
  %v1725 = vld [vmem:[%s3 + $0x314] sm:$0xf]
  %v1726 = vld [vmem:[%s3 + $0x320] sm:$0xff]
  %v1727 = vld [vmem:[%s3 + $0x328] sm:$0xff]
  %v1728 = vld [vmem:[%s3 + $0x330] sm:$0xff]
  %v1729 = vld [vmem:[%s3 + $0x338] sm:$0xf]
  %v1730 = vld [vmem:[%s3 + $0x344] sm:$0xff]
  %v1731 = vld [vmem:[%s3 + $0x34c] sm:$0xff]
  %v1732 = vld [vmem:[%s3 + $0x354] sm:$0xff]
  %v1733 = vld [vmem:[%s3 + $0x35c] sm:$0xf]
  %v1734 = vld [vmem:[%s3 + $0x368] sm:$0xff]
  %v1735 = vld [vmem:[%s3 + $0x370] sm:$0xff]
  %v1736 = vld [vmem:[%s3 + $0x378] sm:$0xff]
  %v1737 = vld [vmem:[%s3 + $0x380] sm:$0xf]
  %v1738 = vld [vmem:[%s3 + $0x38c] sm:$0xff]
  %v1739 = vld [vmem:[%s3 + $0x394] sm:$0xff]
  %v1740 = vld [vmem:[%s3 + $0x39c] sm:$0xff]
  %v1741 = vld [vmem:[%s3 + $0x3a4] sm:$0xf]
  %v1742 = vld [vmem:[%s3 + $0x3b0] sm:$0xff]
  %v1743 = vld [vmem:[%s3 + $0x3b8] sm:$0xff]
  %v1744 = vld [vmem:[%s3 + $0x3c0] sm:$0xff]
  %v1745 = vld [vmem:[%s3 + $0x3c8] sm:$0xf]
  %v1746 = vld [vmem:[%s3 + $0x3d4] sm:$0xff]
  %v1747 = vld [vmem:[%s3 + $0x3dc] sm:$0xff]
  %v1748 = vld [vmem:[%s3 + $0x3e4] sm:$0xff]
  %v1749 = vld [vmem:[%s3 + $0x3ec] sm:$0xf]
  %v1750 = vld [vmem:[%s3 + $0x3f8] sm:$0xff]
  %v1751 = vld [vmem:[%s3 + $0x400] sm:$0xff]
  %v1752 = vld [vmem:[%s3 + $0x408] sm:$0xff]
  %v1753 = vld [vmem:[%s3 + $0x410] sm:$0xf]
  %v1754 = vld [vmem:[%s3 + $0x41c] sm:$0xff]
  %v1755 = vld [vmem:[%s3 + $0x424] sm:$0xff]
  %v1756 = vld [vmem:[%s3 + $0x42c] sm:$0xff]
  %v1757 = vld [vmem:[%s3 + $0x434] sm:$0xf]
  %v1758 = vld [vmem:[%s3 + $0x440] sm:$0xff]
  %v1759 = vld [vmem:[%s3 + $0x448] sm:$0xff]
  %v1760 = vld [vmem:[%s3 + $0x450] sm:$0xff]
  %v1761 = vld [vmem:[%s3 + $0x458] sm:$0xf]
  %v1762 = vld [vmem:[%s3 + $0x464] sm:$0xff]
  %v1763 = vld [vmem:[%s3 + $0x46c] sm:$0xff]
  %v1764 = vld [vmem:[%s3 + $0x474] sm:$0xff]
  %v1765 = vld [vmem:[%s3 + $0x47c] sm:$0xf]
  %v1766 = vld [vmem:[%s6 + $0xa] sm:$0x7f]
  %v1768 = vlaneseq
  %v1769 = vshrl.u32 %v1768, 7
  %v1770 = vsub.s32 0, %v1769
  %v1771 = vrot.slane %v1766, %v1770
  %v1772 = vlaneseq
  %v1773 = vshrl.u32 %v1772, 7
  %v1774 = vsub.s32 1, %v1773
  %v1775 = vrot.slane %v1766, %v1774
  %v1776 = vlaneseq
  %v1777 = vshrl.u32 %v1776, 7
  %v1778 = vsub.s32 2, %v1777
  %v1779 = vrot.slane %v1766, %v1778
  %v1780 = vlaneseq
  %v1781 = vshrl.u32 %v1780, 7
  %v1782 = vsub.s32 3, %v1781
  %v1783 = vrot.slane %v1766, %v1782
  %v1784 = vlaneseq
  %v1785 = vshrl.u32 %v1784, 7
  %v1786 = vsub.s32 4, %v1785
  %v1787 = vrot.slane %v1766, %v1786
  %v1788 = vlaneseq
  %v1789 = vshrl.u32 %v1788, 7
  %v1790 = vsub.s32 5, %v1789
  %v1791 = vrot.slane %v1766, %v1790
  %v1792 = vlaneseq
  %v1793 = vshrl.u32 %v1792, 7
  %v1794 = vsub.s32 6, %v1793
  %v1795 = vrot.slane %v1766, %v1794
  %v1931 = vunpack.c.l.b16 %v1638
  %v1932 = vunpack.c.h.b16 %v1638
  %v1933 = vunpack.c.l.b16 %v1639
  %v1934 = vunpack.c.h.b16 %v1639
  %v1935 = vunpack.c.l.b16 %v1640
  %v1936 = vunpack.c.h.b16 %v1640
  %v1937 = vunpack.c.l.b16 %v1641
  %v1938 = vunpack.c.l.b16 %v1642
  %v1939 = vunpack.c.h.b16 %v1642
  %v1940 = vunpack.c.l.b16 %v1643
  %v1941 = vunpack.c.h.b16 %v1643
  %v1942 = vunpack.c.l.b16 %v1644
  %v1943 = vunpack.c.h.b16 %v1644
  %v1944 = vunpack.c.l.b16 %v1645
  %v1945 = vunpack.c.l.b16 %v1646
  %v1946 = vunpack.c.h.b16 %v1646
  %v1947 = vunpack.c.l.b16 %v1647
  %v1948 = vunpack.c.h.b16 %v1647
  %v1949 = vunpack.c.l.b16 %v1648
  %v1950 = vunpack.c.h.b16 %v1648
  %v1951 = vunpack.c.l.b16 %v1649
  %v1952 = vunpack.c.l.b16 %v1650
  %v1953 = vunpack.c.h.b16 %v1650
  %v1954 = vunpack.c.l.b16 %v1651
  %v1955 = vunpack.c.h.b16 %v1651
  %v1956 = vunpack.c.l.b16 %v1652
  %v1957 = vunpack.c.h.b16 %v1652
  %v1958 = vunpack.c.l.b16 %v1653
  %v1959 = vunpack.c.l.b16 %v1654
  %v1960 = vunpack.c.h.b16 %v1654
  %v1961 = vunpack.c.l.b16 %v1655
  %v1962 = vunpack.c.h.b16 %v1655
  %v1963 = vunpack.c.l.b16 %v1656
  %v1964 = vunpack.c.h.b16 %v1656
  %v1965 = vunpack.c.l.b16 %v1657
  %v1966 = vunpack.c.l.b16 %v1658
  %v1967 = vunpack.c.h.b16 %v1658
  %v1968 = vunpack.c.l.b16 %v1659
  %v1969 = vunpack.c.h.b16 %v1659
  %v1970 = vunpack.c.l.b16 %v1660
  %v1971 = vunpack.c.h.b16 %v1660
  %v1972 = vunpack.c.l.b16 %v1661
  %v1973 = vunpack.c.l.b16 %v1662
  %v1974 = vunpack.c.h.b16 %v1662
  %v1975 = vunpack.c.l.b16 %v1663
  %v1976 = vunpack.c.h.b16 %v1663
  %v1977 = vunpack.c.l.b16 %v1664
  %v1978 = vunpack.c.h.b16 %v1664
  %v1979 = vunpack.c.l.b16 %v1665
  %v1980 = vunpack.c.l.b16 %v1666
  %v1981 = vunpack.c.h.b16 %v1666
  %v1982 = vunpack.c.l.b16 %v1667
  %v1983 = vunpack.c.h.b16 %v1667
  %v1984 = vunpack.c.l.b16 %v1668
  %v1985 = vunpack.c.h.b16 %v1668
  %v1986 = vunpack.c.l.b16 %v1669
  %v1987 = vunpack.c.l.b16 %v1670
  %v1988 = vunpack.c.h.b16 %v1670
  %v1989 = vunpack.c.l.b16 %v1671
  %v1990 = vunpack.c.h.b16 %v1671
  %v1991 = vunpack.c.l.b16 %v1672
  %v1992 = vunpack.c.h.b16 %v1672
  %v1993 = vunpack.c.l.b16 %v1673
  %v1994 = vunpack.c.l.b16 %v1674
  %v1995 = vunpack.c.h.b16 %v1674
  %v1996 = vunpack.c.l.b16 %v1675
  %v1997 = vunpack.c.h.b16 %v1675
  %v1998 = vunpack.c.l.b16 %v1676
  %v1999 = vunpack.c.h.b16 %v1676
  %v2000 = vunpack.c.l.b16 %v1677
  %v2001 = vunpack.c.l.b16 %v1678
  %v2002 = vunpack.c.h.b16 %v1678
  %v2003 = vunpack.c.l.b16 %v1679
  %v2004 = vunpack.c.h.b16 %v1679
  %v2005 = vunpack.c.l.b16 %v1680
  %v2006 = vunpack.c.h.b16 %v1680
  %v2007 = vunpack.c.l.b16 %v1681
  %v2008 = vunpack.c.l.b16 %v1682
  %v2009 = vunpack.c.h.b16 %v1682
  %v2010 = vunpack.c.l.b16 %v1683
  %v2011 = vunpack.c.h.b16 %v1683
  %v2012 = vunpack.c.l.b16 %v1684
  %v2013 = vunpack.c.h.b16 %v1684
  %v2014 = vunpack.c.l.b16 %v1685
  %v2015 = vunpack.c.l.b16 %v1686
  %v2016 = vunpack.c.h.b16 %v1686
  %v2017 = vunpack.c.l.b16 %v1687
  %v2018 = vunpack.c.h.b16 %v1687
  %v2019 = vunpack.c.l.b16 %v1688
  %v2020 = vunpack.c.h.b16 %v1688
  %v2021 = vunpack.c.l.b16 %v1689
  %v2022 = vunpack.c.l.b16 %v1690
  %v2023 = vunpack.c.h.b16 %v1690
  %v2024 = vunpack.c.l.b16 %v1691
  %v2025 = vunpack.c.h.b16 %v1691
  %v2026 = vunpack.c.l.b16 %v1692
  %v2027 = vunpack.c.h.b16 %v1692
  %v2028 = vunpack.c.l.b16 %v1693
  %v2029 = vunpack.c.l.b16 %v1694
  %v2030 = vunpack.c.h.b16 %v1694
  %v2031 = vunpack.c.l.b16 %v1695
  %v2032 = vunpack.c.h.b16 %v1695
  %v2033 = vunpack.c.l.b16 %v1696
  %v2034 = vunpack.c.h.b16 %v1696
  %v2035 = vunpack.c.l.b16 %v1697
  %v2036 = vunpack.c.l.b16 %v1698
  %v2037 = vunpack.c.h.b16 %v1698
  %v2038 = vunpack.c.l.b16 %v1699
  %v2039 = vunpack.c.h.b16 %v1699
  %v2040 = vunpack.c.l.b16 %v1700
  %v2041 = vunpack.c.h.b16 %v1700
  %v2042 = vunpack.c.l.b16 %v1701
  %v2043 = vunpack.c.l.b16 %v1702
  %v2044 = vunpack.c.h.b16 %v1702
  %v2045 = vunpack.c.l.b16 %v1703
  %v2046 = vunpack.c.h.b16 %v1703
  %v2047 = vunpack.c.l.b16 %v1704
  %v2048 = vunpack.c.h.b16 %v1704
  %v2049 = vunpack.c.l.b16 %v1705
  %v2050 = vunpack.c.l.b16 %v1706
  %v2051 = vunpack.c.h.b16 %v1706
  %v2052 = vunpack.c.l.b16 %v1707
  %v2053 = vunpack.c.h.b16 %v1707
  %v2054 = vunpack.c.l.b16 %v1708
  %v2055 = vunpack.c.h.b16 %v1708
  %v2056 = vunpack.c.l.b16 %v1709
  %v2057 = vunpack.c.l.b16 %v1710
  %v2058 = vunpack.c.h.b16 %v1710
  %v2059 = vunpack.c.l.b16 %v1711
  %v2060 = vunpack.c.h.b16 %v1711
  %v2061 = vunpack.c.l.b16 %v1712
  %v2062 = vunpack.c.h.b16 %v1712
  %v2063 = vunpack.c.l.b16 %v1713
  %v2064 = vunpack.c.l.b16 %v1714
  %v2065 = vunpack.c.h.b16 %v1714
  %v2066 = vunpack.c.l.b16 %v1715
  %v2067 = vunpack.c.h.b16 %v1715
  %v2068 = vunpack.c.l.b16 %v1716
  %v2069 = vunpack.c.h.b16 %v1716
  %v2070 = vunpack.c.l.b16 %v1717
  %v2071 = vunpack.c.l.b16 %v1718
  %v2072 = vunpack.c.h.b16 %v1718
  %v2073 = vunpack.c.l.b16 %v1719
  %v2074 = vunpack.c.h.b16 %v1719
  %v2075 = vunpack.c.l.b16 %v1720
  %v2076 = vunpack.c.h.b16 %v1720
  %v2077 = vunpack.c.l.b16 %v1721
  %v2078 = vunpack.c.l.b16 %v1722
  %v2079 = vunpack.c.h.b16 %v1722
  %v2080 = vunpack.c.l.b16 %v1723
  %v2081 = vunpack.c.h.b16 %v1723
  %v2082 = vunpack.c.l.b16 %v1724
  %v2083 = vunpack.c.h.b16 %v1724
  %v2084 = vunpack.c.l.b16 %v1725
  %v2085 = vunpack.c.l.b16 %v1726
  %v2086 = vunpack.c.h.b16 %v1726
  %v2087 = vunpack.c.l.b16 %v1727
  %v2088 = vunpack.c.h.b16 %v1727
  %v2089 = vunpack.c.l.b16 %v1728
  %v2090 = vunpack.c.h.b16 %v1728
  %v2091 = vunpack.c.l.b16 %v1729
  %v2092 = vunpack.c.l.b16 %v1730
  %v2093 = vunpack.c.h.b16 %v1730
  %v2094 = vunpack.c.l.b16 %v1731
  %v2095 = vunpack.c.h.b16 %v1731
  %v2096 = vunpack.c.l.b16 %v1732
  %v2097 = vunpack.c.h.b16 %v1732
  %v2098 = vunpack.c.l.b16 %v1733
  %v2099 = vunpack.c.l.b16 %v1734
  %v2100 = vunpack.c.h.b16 %v1734
  %v2101 = vunpack.c.l.b16 %v1735
  %v2102 = vunpack.c.h.b16 %v1735
  %v2103 = vunpack.c.l.b16 %v1736
  %v2104 = vunpack.c.h.b16 %v1736
  %v2105 = vunpack.c.l.b16 %v1737
  %v2106 = vunpack.c.l.b16 %v1738
  %v2107 = vunpack.c.h.b16 %v1738
  %v2108 = vunpack.c.l.b16 %v1739
  %v2109 = vunpack.c.h.b16 %v1739
  %v2110 = vunpack.c.l.b16 %v1740
  %v2111 = vunpack.c.h.b16 %v1740
  %v2112 = vunpack.c.l.b16 %v1741
  %v2113 = vunpack.c.l.b16 %v1742
  %v2114 = vunpack.c.h.b16 %v1742
  %v2115 = vunpack.c.l.b16 %v1743
  %v2116 = vunpack.c.h.b16 %v1743
  %v2117 = vunpack.c.l.b16 %v1744
  %v2118 = vunpack.c.h.b16 %v1744
  %v2119 = vunpack.c.l.b16 %v1745
  %v2120 = vunpack.c.l.b16 %v1746
  %v2121 = vunpack.c.h.b16 %v1746
  %v2122 = vunpack.c.l.b16 %v1747
  %v2123 = vunpack.c.h.b16 %v1747
  %v2124 = vunpack.c.l.b16 %v1748
  %v2125 = vunpack.c.h.b16 %v1748
  %v2126 = vunpack.c.l.b16 %v1749
  %v2127 = vunpack.c.l.b16 %v1750
  %v2128 = vunpack.c.h.b16 %v1750
  %v2129 = vunpack.c.l.b16 %v1751
  %v2130 = vunpack.c.h.b16 %v1751
  %v2131 = vunpack.c.l.b16 %v1752
  %v2132 = vunpack.c.h.b16 %v1752
  %v2133 = vunpack.c.l.b16 %v1753
  %v2134 = vunpack.c.l.b16 %v1754
  %v2135 = vunpack.c.h.b16 %v1754
  %v2136 = vunpack.c.l.b16 %v1755
  %v2137 = vunpack.c.h.b16 %v1755
  %v2138 = vunpack.c.l.b16 %v1756
  %v2139 = vunpack.c.h.b16 %v1756
  %v2140 = vunpack.c.l.b16 %v1757
  %v2141 = vunpack.c.l.b16 %v1758
  %v2142 = vunpack.c.h.b16 %v1758
  %v2143 = vunpack.c.l.b16 %v1759
  %v2144 = vunpack.c.h.b16 %v1759
  %v2145 = vunpack.c.l.b16 %v1760
  %v2146 = vunpack.c.h.b16 %v1760
  %v2147 = vunpack.c.l.b16 %v1761
  %v2148 = vunpack.c.l.b16 %v1762
  %v2149 = vunpack.c.h.b16 %v1762
  %v2150 = vunpack.c.l.b16 %v1763
  %v2151 = vunpack.c.h.b16 %v1763
  %v2152 = vunpack.c.l.b16 %v1764
  %v2153 = vunpack.c.h.b16 %v1764
  %v2154 = vunpack.c.l.b16 %v1765
  %v2155 = vpack.c.b16 %v1938, %v1931
  %v2156 = vpack.c.b16 %v1939, %v1932
  %v2157 = vpack.c.b16 %v1940, %v1933
  %v2158 = vpack.c.b16 %v1941, %v1934
  %v2159 = vpack.c.b16 %v1942, %v1935
  %v2160 = vpack.c.b16 %v1943, %v1936
  %v2161 = vpack.c.b16 %v1944, %v1937
  %v2162 = vpack.c.b16 %v1952, %v1945
  %v2163 = vpack.c.b16 %v1953, %v1946
  %v2164 = vpack.c.b16 %v1954, %v1947
  %v2165 = vpack.c.b16 %v1955, %v1948
  %v2166 = vpack.c.b16 %v1956, %v1949
  %v2167 = vpack.c.b16 %v1957, %v1950
  %v2168 = vpack.c.b16 %v1958, %v1951
  %v2169 = vpack.c.b16 %v1966, %v1959
  %v2170 = vpack.c.b16 %v1967, %v1960
  %v2171 = vpack.c.b16 %v1968, %v1961
  %v2172 = vpack.c.b16 %v1969, %v1962
  %v2173 = vpack.c.b16 %v1970, %v1963
  %v2174 = vpack.c.b16 %v1971, %v1964
  %v2175 = vpack.c.b16 %v1972, %v1965
  %v2176 = vpack.c.b16 %v1980, %v1973
  %v2177 = vpack.c.b16 %v1981, %v1974
  %v2178 = vpack.c.b16 %v1982, %v1975
  %v2179 = vpack.c.b16 %v1983, %v1976
  %v2180 = vpack.c.b16 %v1984, %v1977
  %v2181 = vpack.c.b16 %v1985, %v1978
  %v2182 = vpack.c.b16 %v1986, %v1979
  %v2183 = vpack.c.b16 %v1994, %v1987
  %v2184 = vpack.c.b16 %v1995, %v1988
  %v2185 = vpack.c.b16 %v1996, %v1989
  %v2186 = vpack.c.b16 %v1997, %v1990
  %v2187 = vpack.c.b16 %v1998, %v1991
  %v2188 = vpack.c.b16 %v1999, %v1992
  %v2189 = vpack.c.b16 %v2000, %v1993
  %v2190 = vpack.c.b16 %v2008, %v2001
  %v2191 = vpack.c.b16 %v2009, %v2002
  %v2192 = vpack.c.b16 %v2010, %v2003
  %v2193 = vpack.c.b16 %v2011, %v2004
  %v2194 = vpack.c.b16 %v2012, %v2005
  %v2195 = vpack.c.b16 %v2013, %v2006
  %v2196 = vpack.c.b16 %v2014, %v2007
  %v2197 = vpack.c.b16 %v2022, %v2015
  %v2198 = vpack.c.b16 %v2023, %v2016
  %v2199 = vpack.c.b16 %v2024, %v2017
  %v2200 = vpack.c.b16 %v2025, %v2018
  %v2201 = vpack.c.b16 %v2026, %v2019
  %v2202 = vpack.c.b16 %v2027, %v2020
  %v2203 = vpack.c.b16 %v2028, %v2021
  %v2204 = vpack.c.b16 %v2036, %v2029
  %v2205 = vpack.c.b16 %v2037, %v2030
  %v2206 = vpack.c.b16 %v2038, %v2031
  %v2207 = vpack.c.b16 %v2039, %v2032
  %v2208 = vpack.c.b16 %v2040, %v2033
  %v2209 = vpack.c.b16 %v2041, %v2034
  %v2210 = vpack.c.b16 %v2042, %v2035
  %v2211 = vpack.c.b16 %v2050, %v2043
  %v2212 = vpack.c.b16 %v2051, %v2044
  %v2213 = vpack.c.b16 %v2052, %v2045
  %v2214 = vpack.c.b16 %v2053, %v2046
  %v2215 = vpack.c.b16 %v2054, %v2047
  %v2216 = vpack.c.b16 %v2055, %v2048
  %v2217 = vpack.c.b16 %v2056, %v2049
  %v2218 = vpack.c.b16 %v2064, %v2057
  %v2219 = vpack.c.b16 %v2065, %v2058
  %v2220 = vpack.c.b16 %v2066, %v2059
  %v2221 = vpack.c.b16 %v2067, %v2060
  %v2222 = vpack.c.b16 %v2068, %v2061
  %v2223 = vpack.c.b16 %v2069, %v2062
  %v2224 = vpack.c.b16 %v2070, %v2063
  %v2225 = vpack.c.b16 %v2078, %v2071
  %v2226 = vpack.c.b16 %v2079, %v2072
  %v2227 = vpack.c.b16 %v2080, %v2073
  %v2228 = vpack.c.b16 %v2081, %v2074
  %v2229 = vpack.c.b16 %v2082, %v2075
  %v2230 = vpack.c.b16 %v2083, %v2076
  %v2231 = vpack.c.b16 %v2084, %v2077
  %v2232 = vpack.c.b16 %v2092, %v2085
  %v2233 = vpack.c.b16 %v2093, %v2086
  %v2234 = vpack.c.b16 %v2094, %v2087
  %v2235 = vpack.c.b16 %v2095, %v2088
  %v2236 = vpack.c.b16 %v2096, %v2089
  %v2237 = vpack.c.b16 %v2097, %v2090
  %v2238 = vpack.c.b16 %v2098, %v2091
  %v2239 = vpack.c.b16 %v2106, %v2099
  %v2240 = vpack.c.b16 %v2107, %v2100
  %v2241 = vpack.c.b16 %v2108, %v2101
  %v2242 = vpack.c.b16 %v2109, %v2102
  %v2243 = vpack.c.b16 %v2110, %v2103
  %v2244 = vpack.c.b16 %v2111, %v2104
  %v2245 = vpack.c.b16 %v2112, %v2105
  %v2246 = vpack.c.b16 %v2120, %v2113
  %v2247 = vpack.c.b16 %v2121, %v2114
  %v2248 = vpack.c.b16 %v2122, %v2115
  %v2249 = vpack.c.b16 %v2123, %v2116
  %v2250 = vpack.c.b16 %v2124, %v2117
  %v2251 = vpack.c.b16 %v2125, %v2118
  %v2252 = vpack.c.b16 %v2126, %v2119
  %v2253 = vpack.c.b16 %v2134, %v2127
  %v2254 = vpack.c.b16 %v2135, %v2128
  %v2255 = vpack.c.b16 %v2136, %v2129
  %v2256 = vpack.c.b16 %v2137, %v2130
  %v2257 = vpack.c.b16 %v2138, %v2131
  %v2258 = vpack.c.b16 %v2139, %v2132
  %v2259 = vpack.c.b16 %v2140, %v2133
  %v2260 = vpack.c.b16 %v2148, %v2141
  %v2261 = vpack.c.b16 %v2149, %v2142
  %v2262 = vpack.c.b16 %v2150, %v2143
  %v2263 = vpack.c.b16 %v2151, %v2144
  %v2264 = vpack.c.b16 %v2152, %v2145
  %v2265 = vpack.c.b16 %v2153, %v2146
  %v2266 = vpack.c.b16 %v2154, %v2147
  %2379 = vmatprep.subr.bf16.mxu0 %v2156
  %2380 = vmatpush1.bf16.msra.mxu0 %v2155
  %2381 = vmatprep.subr.bf16.mxu0 %v2163
  %2382 = vmatpush1.bf16.msra.mxu0 %v2162
  %2383 = vmatprep.subr.bf16.mxu0 %v2170
  %2384 = vmatpush1.bf16.msra.mxu0 %v2169
  %2385 = vmatprep.subr.bf16.mxu0 %v2177
  %2386 = vmatpush1.bf16.msra.mxu0 %v2176
  %2387 = vmatprep.subr.bf16.mxu0 %v2184
  %2388 = vmatpush1.bf16.msra.mxu0 %v2183
  %2389 = vmatprep.subr.bf16.mxu0 %v2191
  %2390 = vmatpush1.bf16.msra.mxu0 %v2190
  %2391 = vmatprep.subr.bf16.mxu0 %v2198
  %2392 = vmatpush1.bf16.msra.mxu0 %v2197
  %2393 = vmatprep.subr.bf16.mxu0 %v2205
  %2394 = vmatpush1.bf16.msra.mxu0 %v2204
  %2395 = vmatprep.subr.bf16.mxu0 %v2212
  %2396 = vmatpush1.bf16.msra.mxu0 %v2211
  %2397 = vmatprep.subr.bf16.mxu0 %v2219
  %2398 = vmatpush1.bf16.msra.mxu0 %v2218
  %2399 = vmatprep.subr.bf16.mxu0 %v2226
  %2400 = vmatpush1.bf16.msra.mxu0 %v2225
  %2401 = vmatprep.subr.bf16.mxu0 %v2233
  %2402 = vmatpush1.bf16.msra.mxu0 %v2232
  %2403 = vmatprep.subr.bf16.mxu0 %v2240
  %2404 = vmatpush1.bf16.msra.mxu0 %v2239
  %2405 = vmatprep.subr.bf16.mxu0 %v2247
  %2406 = vmatpush1.bf16.msra.mxu0 %v2246
  %2407 = vmatprep.subr.bf16.mxu0 %v2254
  %2408 = vmatpush1.bf16.msra.mxu0 %v2253
  %2409 = vmatprep.subr.bf16.mxu0 %v2261
  %2410 = vmatpush1.bf16.msra.mxu0 %v2260
  %2411 = vmatprep.mubr.bf16.mxu0 %v1637
  %2412 = vmatmul.mubr.bf16.gmra.mrb[0].mxu0 %v1636
  %v2413 = vpop.f32.mrb[0].mxu0
  %v2414 = vadd.f32 %v1771, %v2413
  %v2415 = vpop.f32.mrb[0].mxu0
  %v2416 = vadd.f32 %v1775, %v2415
  %v2417 = vpop.f32.mrb[0].mxu0
  %v2418 = vpop.f32.mrb[0].mxu0
  %2419 = vdwg.mxu0
  %2420 = vmatprep.subr.bf16.mxu0 %v2158
  %2421 = vmatpush1.bf16.msra.mxu0 %v2157
  %2422 = vmatprep.subr.bf16.mxu0 %v2165
  %2423 = vmatpush1.bf16.msra.mxu0 %v2164
  %2424 = vmatprep.subr.bf16.mxu0 %v2172
  %2425 = vmatpush1.bf16.msra.mxu0 %v2171
  %2426 = vmatprep.subr.bf16.mxu0 %v2179
  %2427 = vmatpush1.bf16.msra.mxu0 %v2178
  %2428 = vmatprep.subr.bf16.mxu0 %v2186
  %2429 = vmatpush1.bf16.msra.mxu0 %v2185
  %2430 = vmatprep.subr.bf16.mxu0 %v2193
  %2431 = vmatpush1.bf16.msra.mxu0 %v2192
  %2432 = vmatprep.subr.bf16.mxu0 %v2200
  %2433 = vmatpush1.bf16.msra.mxu0 %v2199
  %2434 = vmatprep.subr.bf16.mxu0 %v2207
  %2435 = vmatpush1.bf16.msra.mxu0 %v2206
  %2436 = vmatprep.subr.bf16.mxu0 %v2214
  %2437 = vmatpush1.bf16.msra.mxu0 %v2213
  %2438 = vmatprep.subr.bf16.mxu0 %v2221
  %2439 = vmatpush1.bf16.msra.mxu0 %v2220
  %2440 = vmatprep.subr.bf16.mxu0 %v2228
  %2441 = vmatpush1.bf16.msra.mxu0 %v2227
  %2442 = vmatprep.subr.bf16.mxu0 %v2235
  %2443 = vmatpush1.bf16.msra.mxu0 %v2234
  %2444 = vmatprep.subr.bf16.mxu0 %v2242
  %2445 = vmatpush1.bf16.msra.mxu0 %v2241
  %2446 = vmatprep.subr.bf16.mxu0 %v2249
  %2447 = vmatpush1.bf16.msra.mxu0 %v2248
  %2448 = vmatprep.subr.bf16.mxu0 %v2256
  %2449 = vmatpush1.bf16.msra.mxu0 %v2255
  %2450 = vmatprep.subr.bf16.mxu0 %v2263
  %2451 = vmatpush1.bf16.msra.mxu0 %v2262
  %2452 = vmatprep.mubr.bf16.mxu0 %v1637
  %2453 = vmatmul.mubr.bf16.gmra.mrb[0].mxu0 %v1636
  %v2454 = vpop.f32.mrb[0].mxu0
  %v2455 = vadd.f32 %v1779, %v2454
  %v2456 = vpop.f32.mrb[0].mxu0
  %v2457 = vadd.f32 %v1783, %v2456
  %v2458 = vpop.f32.mrb[0].mxu0
  %v2459 = vpop.f32.mrb[0].mxu0
  %2460 = vdwg.mxu0
  %2461 = vmatprep.subr.bf16.mxu0 %v2160
  %2462 = vmatpush1.bf16.msra.mxu0 %v2159
  %2463 = vmatprep.subr.bf16.mxu0 %v2167
  %2464 = vmatpush1.bf16.msra.mxu0 %v2166
  %2465 = vmatprep.subr.bf16.mxu0 %v2174
  %2466 = vmatpush1.bf16.msra.mxu0 %v2173
  %2467 = vmatprep.subr.bf16.mxu0 %v2181
  %2468 = vmatpush1.bf16.msra.mxu0 %v2180
  %2469 = vmatprep.subr.bf16.mxu0 %v2188
  %2470 = vmatpush1.bf16.msra.mxu0 %v2187
  %2471 = vmatprep.subr.bf16.mxu0 %v2195
  %2472 = vmatpush1.bf16.msra.mxu0 %v2194
  %2473 = vmatprep.subr.bf16.mxu0 %v2202
  %2474 = vmatpush1.bf16.msra.mxu0 %v2201
  %2475 = vmatprep.subr.bf16.mxu0 %v2209
  %2476 = vmatpush1.bf16.msra.mxu0 %v2208
  %2477 = vmatprep.subr.bf16.mxu0 %v2216
  %2478 = vmatpush1.bf16.msra.mxu0 %v2215
  %2479 = vmatprep.subr.bf16.mxu0 %v2223
  %2480 = vmatpush1.bf16.msra.mxu0 %v2222
  %2481 = vmatprep.subr.bf16.mxu0 %v2230
  %2482 = vmatpush1.bf16.msra.mxu0 %v2229
  %2483 = vmatprep.subr.bf16.mxu0 %v2237
  %2484 = vmatpush1.bf16.msra.mxu0 %v2236
  %2485 = vmatprep.subr.bf16.mxu0 %v2244
  %2486 = vmatpush1.bf16.msra.mxu0 %v2243
  %2487 = vmatprep.subr.bf16.mxu0 %v2251
  %2488 = vmatpush1.bf16.msra.mxu0 %v2250
  %2489 = vmatprep.subr.bf16.mxu0 %v2258
  %2490 = vmatpush1.bf16.msra.mxu0 %v2257
  %2491 = vmatprep.subr.bf16.mxu0 %v2265
  %2492 = vmatpush1.bf16.msra.mxu0 %v2264
  %2493 = vmatprep.mubr.bf16.mxu0 %v1637
  %2494 = vmatmul.mubr.bf16.gmra.mrb[0].mxu0 %v1636
  %v2495 = vpop.f32.mrb[0].mxu0
  %v2496 = vadd.f32 %v1787, %v2495
  %v2497 = vpop.f32.mrb[0].mxu0
  %v2498 = vadd.f32 %v1791, %v2497
  %v2499 = vpop.f32.mrb[0].mxu0
  %v2500 = vpop.f32.mrb[0].mxu0
  %2501 = vdwg.mxu0
  %2502 = vmatprep.subr.bf16.mxu0 0
  %2503 = vmatpush1.bf16.msra.mxu0 %v2161
  %2504 = vmatprep.subr.bf16.mxu0 0
  %2505 = vmatpush1.bf16.msra.mxu0 %v2168
  %2506 = vmatprep.subr.bf16.mxu0 0
  %2507 = vmatpush1.bf16.msra.mxu0 %v2175
  %2508 = vmatprep.subr.bf16.mxu0 0
  %2509 = vmatpush1.bf16.msra.mxu0 %v2182
  %2510 = vmatprep.subr.bf16.mxu0 0
  %2511 = vmatpush1.bf16.msra.mxu0 %v2189
  %2512 = vmatprep.subr.bf16.mxu0 0
  %2513 = vmatpush1.bf16.msra.mxu0 %v2196
  %2514 = vmatprep.subr.bf16.mxu0 0
  %2515 = vmatpush1.bf16.msra.mxu0 %v2203
  %2516 = vmatprep.subr.bf16.mxu0 0
  %2517 = vmatpush1.bf16.msra.mxu0 %v2210
  %2518 = vmatprep.subr.bf16.mxu0 0
  %2519 = vmatpush1.bf16.msra.mxu0 %v2217
  %2520 = vmatprep.subr.bf16.mxu0 0
  %2521 = vmatpush1.bf16.msra.mxu0 %v2224
  %2522 = vmatprep.subr.bf16.mxu0 0
  %2523 = vmatpush1.bf16.msra.mxu0 %v2231
  %2524 = vmatprep.subr.bf16.mxu0 0
  %2525 = vmatpush1.bf16.msra.mxu0 %v2238
  %2526 = vmatprep.subr.bf16.mxu0 0
  %2527 = vmatpush1.bf16.msra.mxu0 %v2245
  %2528 = vmatprep.subr.bf16.mxu0 0
  %2529 = vmatpush1.bf16.msra.mxu0 %v2252
  %2530 = vmatprep.subr.bf16.mxu0 0
  %2531 = vmatpush1.bf16.msra.mxu0 %v2259
  %2532 = vmatprep.subr.bf16.mxu0 0
  %2533 = vmatpush1.bf16.msra.mxu0 %v2266
  %2534 = vmatprep.mubr.bf16.mxu0 %v1637
  %2535 = vmatmul.mubr.bf16.gmra.mrb[0].mxu0 %v1636
  %v2536 = vpop.f32.mrb[0].mxu0
  %v2537 = vadd.f32 %v1795, %v2536
  %v2538 = vpop.f32.mrb[0].mxu0
  %v2539 = vpop.f32.mrb[0].mxu0
  %v2540 = vpop.f32.mrb[0].mxu0
  %2541 = vdwg.mxu0
  %v2542 = vxor.u32 %v2414, 2147483648
  %v2543 = vxor.u32 %v2416, 2147483648
  %v2544 = vxor.u32 %v2455, 2147483648
  %v2545 = vxor.u32 %v2457, 2147483648
  %v2546 = vxor.u32 %v2496, 2147483648
  %v2547 = vxor.u32 %v2498, 2147483648
  %v2548 = vxor.u32 %v2537, 2147483648
  %v2549 = vmul.f32 %v2542, 1.442695
  %v2550 = vpow.pop %v2549
  %v2551 = vmul.f32 %v2543, 1.442695
  %v2552 = vpow.pop %v2551
  %v2553 = vmul.f32 %v2544, 1.442695
  %v2554 = vpow.pop %v2553
  %v2555 = vmul.f32 %v2545, 1.442695
  %v2556 = vpow.pop %v2555
  %v2557 = vmul.f32 %v2546, 1.442695
  %v2558 = vpow.pop %v2557
  %v2559 = vmul.f32 %v2547, 1.442695
  %v2560 = vpow.pop %v2559
  %v2561 = vmul.f32 %v2548, 1.442695
  %v2562 = vpow.pop %v2561
  %v2563 = vadd.f32 %v2550, 1.0
  %v2564 = vadd.f32 %v2552, 1.0
  %v2565 = vadd.f32 %v2554, 1.0
  %v2566 = vadd.f32 %v2556, 1.0
  %v2567 = vadd.f32 %v2558, 1.0
  %v2568 = vadd.f32 %v2560, 1.0
  %v2569 = vadd.f32 %v2562, 1.0
  %v2570 = vrcp.pop %v2563
  %v2571 = vmul.f32 1.0, %v2570
  %v2572 = vrcp.pop %v2564
  %v2573 = vmul.f32 1.0, %v2572
  %v2574 = vrcp.pop %v2565
  %v2575 = vmul.f32 1.0, %v2574
  %v2576 = vrcp.pop %v2566
  %v2577 = vmul.f32 1.0, %v2576
  %v2578 = vrcp.pop %v2567
  %v2579 = vmul.f32 1.0, %v2578
  %v2580 = vrcp.pop %v2568
  %v2581 = vmul.f32 1.0, %v2580
  %v2582 = vrcp.pop %v2569
  %v2583 = vmul.f32 1.0, %v2582
  %v2591 = vcombine.low %v2571, %v2573
  %v2592 = vcombine.low %v2575, %v2577
  %v2594 = vunpack.c.l.s4 1983009808
  %v2595 = vunpack.c.0.s8 %v2594
  %v2596 = vlaneseq
  %v2597 = vshrl.u32 %v2596, 7
  %v2598 = vsub.s32 %v2595, %v2597
  %v2599 = vrot.slane %v2591, %v2598
  %v2601 = vunpack.c.l.s4 1983009808
  %v2602 = vunpack.c.0.s8 %v2601
  %v2603 = vlaneseq
  %v2604 = vshrl.u32 %v2603, 7
  %v2605 = vsub.s32 %v2602, %v2604
  %v2606 = vrot.slane %v2592, %v2605
  %v2607 = vcombine.low %v2599, %v2606
  %v2608 = vcombine.low %v2579, %v2581
  %v2610 = vunpack.c.l.s4 1983009808
  %v2611 = vunpack.c.0.s8 %v2610
  %v2612 = vlaneseq
  %v2613 = vshrl.u32 %v2612, 7
  %v2614 = vsub.s32 %v2611, %v2613
  %v2615 = vrot.slane %v2608, %v2614
  %v2617 = vunpack.c.l.s4 1983009808
  %v2618 = vunpack.c.0.s8 %v2617
  %v2619 = vlaneseq
  %v2620 = vshrl.u32 %v2619, 7
  %v2621 = vsub.s32 %v2618, %v2620
  %v2622 = vrot.slane %v2583, %v2621
  %v2623 = vcombine.low %v2615, %v2622
  %2626 = vst [vmem:[%s7] sm:$0xff] %v2607
  %vm2627 = vcmask 1041408
  %vm2628 = vcmask 1043458
  %vm2629 = vmor %vm2628, %vm2627
  %vm2630 = vcmask 128004
  %vm2631 = vmor %vm2630, %vm2629
  %2632 = vst.msk [vmem:[%s7 + $0x8] sm:$0x3f] %vm2631, %v2623
  // Predicated region
  $region30: #{ladder_vae_forward.1} parent=0 // pred_check
    _
  $region31: #{ladder_vae_forward.1} parent=0 // pred_check_branch
    %2634 = sbr.rel (0) target = $region33
  $region32: #{ladder_vae_forward.1} parent=0 // pred_region
    _
  $region33: #{ladder_vae_forward.1} parent=0 // pred_fallthru
    _
  // Predicated region
  $region34: #{ladder_vae_forward.1} parent=0 // pred_check
    _
  $region35: #{ladder_vae_forward.1} parent=0 // pred_check_branch
    %2636 = sbr.rel (0) target = $region37
  $region36: #{ladder_vae_forward.1} parent=0 // pred_region
    _
  $region37: #{ladder_vae_forward.1} parent=0 // pred_fallthru
    _

</llo_original>
